<compile_context>
chip_gen: v5e
topology: v5e:2x2
jax: 0.10.0
libtpu: 0.0.40
codegen_flags: <defaults>
</compile_context>

<pallas_src>
import functools

import jax
import jax.numpy as jnp
from jax import lax
from jax.experimental import pallas as pl
from jax.experimental.pallas import tpu as pltpu

SUBLANES = 8    # batch padded to a full sublane group
LANES = 128     # each gate's hidden width padded to a full lane group


# ----------------------------------------------------------------------------
# Pallas kernel: masked (packed-sequence) GRU recurrence over the full sequence.
# Only the serially-dependent part lives here; the input projection is in XLA.
# ----------------------------------------------------------------------------
def gru_kernel(gi_ref, h0_ref, whh_ref, bhn_ref, mask_ref, out_ref, hn_ref,
               *, seq_len, hidden, hidden_pad):
    """Single-layer unidirectional GRU with length masking (padded layout).

    gi_ref   : (T, Bp, 3*Hp)  precomputed x@Wih^T + biases; gates r|z|n each in
                              their own 128-lane block (real data in lanes 0:H)
    h0_ref   : (Bp, Hp)       initial hidden (zero-padded)
    whh_ref  : (H, 3*Hp)      hidden->gate weights, per-gate 128-lane blocks
    bhn_ref  : (Bp, Hp)       b_hn pre-broadcast (stays inside r * (.))
    mask_ref : (T, Bp, Hp)    f32 validity mask, pre-broadcast over lanes
    out_ref  : (Bp, T*Hp)     step t -> lanes [t*Hp, (t+1)*Hp)
    hn_ref   : (Bp, Hp)       final hidden (frozen at last valid step)
    """
    T, H, Hp = seq_len, hidden, hidden_pad

    whh = whh_ref[...]          # (H, 3*Hp) loaded once, lives in vregs
    b_hn = bhn_ref[...]         # (Bp, Hp)  loaded once
    h = h0_ref[...]             # (Bp, Hp)  carried in vregs

    # Statically unrolled time loop: all indices are compile-time constants,
    # so every load/store below is an unmasked, vreg-aligned tile access.
    for t in range(T):
        gi = gi_ref[t]                                             # (Bp, 3*Hp)
        # Only serially-dependent matmul on the critical path.
        gh = jnp.dot(h[:, :H], whh,
                     preferred_element_type=jnp.float32)           # (Bp, 3*Hp)

        # One sigmoid over the fused r|z block; slices land on vreg boundaries.
        rz = jax.nn.sigmoid(gi[:, :2 * Hp] + gh[:, :2 * Hp])
        r = rz[:, :Hp]
        z = rz[:, Hp:2 * Hp]
        n = jnp.tanh(gi[:, 2 * Hp:] + r * (gh[:, 2 * Hp:] + b_hn))
        h_new = n + z * (h - n)            # == (1 - z) * n + z * h

        valid = mask_ref[t]                                        # (Bp, Hp)
        masked = valid * h_new
        # Lane-dense store: one unmasked (8,128) tile at lane offset 128*t.
        out_ref[:, t * Hp:(t + 1) * Hp] = masked
        h = masked + (1.0 - valid) * h     # freeze h past the sequence length

    hn_ref[...] = h


# ----------------------------------------------------------------------------
# Wrapper: batch-first API matching nn.GRU(batch_first=True) + pack/pad.
# ----------------------------------------------------------------------------
def gru_forward_pallas(x_btd, h0, w_ih, w_hh, b_ih, b_hh, lengths):
    """x_btd: (B, T, D); h0: (1, B, H); w_ih: (3H, D); w_hh: (3H, H)."""
    B, T, D = x_btd.shape
    H = h0.shape[-1]
    assert H <= LANES, "hidden size > 128 needs a lane-blocked layout"
    Bp = ((B + SUBLANES - 1) // SUBLANES) * SUBLANES
    Hp = LANES

    # ---- input projection + bias folding (XLA; off the serial path) --------
    wih_t = jnp.transpose(w_ih, (1, 0)).astype(jnp.float32)          # (D, 3H)
    b_i = b_ih.reshape(3, H).astype(jnp.float32)
    b_h = b_hh.reshape(3, H).astype(jnp.float32)
    # Fold b_hh into b_ih for r/z; keep b_hn separate (inside r * (Whn h + b_hn)).
    bias_rzn = jnp.stack([b_i[0] + b_h[0], b_i[1] + b_h[1], b_i[2]], axis=0)

    gi = jnp.einsum('btd,dg->btg', x_btd.astype(jnp.float32), wih_t)  # (B,T,3H)
    gi = gi.reshape(B, T, 3, H) + bias_rzn[None, None]                # (B,T,3,H)
    # Pad batch -> Bp sublanes, each gate's H -> 128 lanes, go time-major.
    gi = jnp.pad(gi, ((0, Bp - B), (0, 0), (0, 0), (0, Hp - H)))
    gi = jnp.transpose(gi, (1, 0, 2, 3)).reshape(T, Bp, 3 * Hp)

    # ---- hidden->gate weights, per-gate 128-lane blocks ---------------------
    w_hh_g = w_hh.reshape(3, H, H).astype(jnp.float32)                # (3, H, H)
    whh_k = jnp.zeros((H, 3 * Hp), jnp.float32)
    for g in range(3):
        whh_k = whh_k.at[:, g * Hp:g * Hp + H].set(jnp.transpose(w_hh_g[g]))

    # ---- b_hn pre-broadcast, padded initial hidden --------------------------
    bhn = jnp.zeros((Bp, Hp), jnp.float32).at[:, :H].set(b_h[2][None, :])
    h0p = jnp.zeros((Bp, Hp), jnp.float32).at[:B, :H].set(
        h0.reshape(B, H).astype(jnp.float32))

    # ---- validity mask (pack/pad semantics), pre-broadcast over lanes -------
    t_idx = jnp.arange(T, dtype=jnp.int32)
    len_p = jnp.zeros((Bp,), jnp.int32).at[:B].set(lengths.astype(jnp.int32))
    mask = (t_idx[:, None] < len_p[None, :]).astype(jnp.float32)      # (T, Bp)
    mask = jnp.broadcast_to(mask[:, :, None], (T, Bp, Hp))

    kernel = functools.partial(gru_kernel, seq_len=T, hidden=H, hidden_pad=Hp)
    out_flat, h_n = pl.pallas_call(
        kernel,
        out_shape=(
            jax.ShapeDtypeStruct((Bp, T * Hp), jnp.float32),
            jax.ShapeDtypeStruct((Bp, Hp), jnp.float32),
        ),
        in_specs=[pl.BlockSpec(memory_space=pltpu.MemorySpace.VMEM)] * 5,
        out_specs=(
            pl.BlockSpec(memory_space=pltpu.MemorySpace.VMEM),
            pl.BlockSpec(memory_space=pltpu.MemorySpace.VMEM),
        ),
    )(gi, h0p, whh_k, bhn, mask)

    # Metadata reshape + slice only; no XLA transpose needed any more.
    out_bth = out_flat.reshape(Bp, T, Hp)[:B, :, :H]                  # (B, T, H)
    return out_bth, h_n[:B, :H]


def encoder_pyrnn_forward(params, inputs, hidden, input_lengths):
    """EncoderPyRNN.forward with config defaults (1 GRU layer, no DNN, uni-dir)."""
    outputs, h_n = gru_forward_pallas(
        inputs, hidden,
        params["w_ih"], params["w_hh"], params["b_ih"], params["b_hh"],
        input_lengths,
    )
    hidden_out = h_n[None]  # (num_layers * num_directions = 1, B, H)
    return outputs, hidden_out, input_lengths


# ----------------------------------------------------------------------------
# Pure-JAX reference (mirrors PyTorch GRU + pack/pad semantics) for checking.
# ----------------------------------------------------------------------------
def gru_reference(x_btd, h0_bh, w_ih, w_hh, b_ih, b_hh, lengths):
    B, T, D = x_btd.shape
    w_ir, w_iz, w_in = jnp.split(w_ih, 3, axis=0)
    w_hr, w_hz, w_hn = jnp.split(w_hh, 3, axis=0)
    b_ir, b_iz, b_in = jnp.split(b_ih, 3)
    b_hr, b_hz, b_hn = jnp.split(b_hh, 3)

    def step(h, inp):
        x_t, t = inp
        r = jax.nn.sigmoid(x_t @ w_ir.T + b_ir + h @ w_hr.T + b_hr)
        z = jax.nn.sigmoid(x_t @ w_iz.T + b_iz + h @ w_hz.T + b_hz)
        n = jnp.tanh(x_t @ w_in.T + b_in + r * (h @ w_hn.T + b_hn))
        h_new = (1.0 - z) * n + z * h
        valid = (t < lengths)[:, None].astype(jnp.float32)
        h_next = valid * h_new + (1.0 - valid) * h
        return h_next, valid * h_new

    h_n, outs = lax.scan(step, h0_bh,
                         (jnp.transpose(x_btd, (1, 0, 2)), jnp.arange(T)))
    return jnp.transpose(outs, (1, 0, 2)), h_n


# ----------------------------------------------------------------------------
if __name__ == "__main__":
    # config = {'n_channels': 4, 'encoder_hidden': 32}  (other keys default)
    B, T, D, H = 2, 8, 4, 32

    key = jax.random.PRNGKey(0)
    k_x, k_wi, k_wh, k_bi, k_bh = jax.random.split(key, 5)

    # PyTorch nn.GRU init: uniform(-1/sqrt(H), 1/sqrt(H)); gate order (r, z, n).
    bound = 1.0 / jnp.sqrt(jnp.float32(H))
    params = {
        "w_ih": jax.random.uniform(k_wi, (3 * H, D), jnp.float32, -bound, bound),
        "w_hh": jax.random.uniform(k_wh, (3 * H, H), jnp.float32, -bound, bound),
        "b_ih": jax.random.uniform(k_bi, (3 * H,), jnp.float32, -bound, bound),
        "b_hh": jax.random.uniform(k_bh, (3 * H,), jnp.float32, -bound, bound),
    }

    inputs = jax.random.normal(k_x, (B, T, D), jnp.float32)   # (batch, seq, n_channels)
    hidden = jnp.zeros((1, B, H), jnp.float32)                # init_hidden(batch)
    input_lengths = jnp.array([8, 5], jnp.int32)              # sorted desc, max == T

    outputs, hidden_out, lengths_out = encoder_pyrnn_forward(
        params, inputs, hidden, input_lengths)
    outputs = jax.block_until_ready(outputs)
    hidden_out = jax.block_until_ready(hidden_out)

    ref_out, ref_hn = gru_reference(
        inputs, hidden[0], params["w_ih"], params["w_hh"],
        params["b_ih"], params["b_hh"], input_lengths)

    assert outputs.shape == (B, T, H) and hidden_out.shape == (1, B, H)
    assert jnp.allclose(outputs, ref_out, atol=1e-5, rtol=1e-5)
    assert jnp.allclose(hidden_out[0], ref_hn, atol=1e-5, rtol=1e-5)

    print("KERNEL_OK")
</pallas_src>

<mosaic_0001>
module attributes {stable_mosaic.version = 11 : i64} {
  func.func @gru_kernel(%arg0: memref<8x8x384xf32, #tpu.memory_space<vmem>>, %arg1: memref<8x128xf32, #tpu.memory_space<vmem>>, %arg2: memref<32x384xf32, #tpu.memory_space<vmem>>, %arg3: memref<8x128xf32, #tpu.memory_space<vmem>>, %arg4: memref<8x8x128xf32, #tpu.memory_space<vmem>>, %arg5: memref<8x1024xf32, #tpu.memory_space<vmem>>, %arg6: memref<8x128xf32, #tpu.memory_space<vmem>>) attributes {dimension_semantics = [], scalar_prefetch = 0 : i64, scratch_operands = 0 : i64, tpu.core_type = #tpu.core_type<tc>} {
    %c0 = arith.constant 0 : index
    %c0_0 = arith.constant 0 : index
    %0 = vector.load %arg2[%c0, %c0_0] : memref<32x384xf32, #tpu.memory_space<vmem>>, vector<32x384xf32>
    %c0_1 = arith.constant 0 : index
    %c0_2 = arith.constant 0 : index
    %1 = vector.load %arg3[%c0_1, %c0_2] : memref<8x128xf32, #tpu.memory_space<vmem>>, vector<8x128xf32>
    %c0_3 = arith.constant 0 : index
    %c0_4 = arith.constant 0 : index
    %2 = vector.load %arg1[%c0_3, %c0_4] : memref<8x128xf32, #tpu.memory_space<vmem>>, vector<8x128xf32>
    %c0_5 = arith.constant 0 : index
    %c0_6 = arith.constant 0 : index
    %c0_7 = arith.constant 0 : index
    %3 = vector.load %arg0[%c0_5, %c0_6, %c0_7] : memref<8x8x384xf32, #tpu.memory_space<vmem>>, vector<1x8x384xf32>
    %4 = vector.shape_cast %3 : vector<1x8x384xf32> to vector<8x384xf32>
    %5 = vector.extract_strided_slice %2 {offsets = [0, 0], sizes = [8, 32], strides = [1, 1]} : vector<8x128xf32> to vector<8x32xf32>
    %cst = arith.constant dense<0.000000e+00> : vector<8x384xf32>
    %6 = tpu.matmul %5, %0, %cst {dimension_numbers = #tpu.dot_dimension_numbers<[1], [0], [0], [1], [0, 0, 1, 1], [], []>} : vector<8x32xf32>, vector<32x384xf32>, vector<8x384xf32> -> vector<8x384xf32>
    %7 = vector.extract_strided_slice %4 {offsets = [0, 0], sizes = [8, 256], strides = [1, 1]} : vector<8x384xf32> to vector<8x256xf32>
    %8 = vector.extract_strided_slice %6 {offsets = [0, 0], sizes = [8, 256], strides = [1, 1]} : vector<8x384xf32> to vector<8x256xf32>
    %9 = arith.addf %7, %8 : vector<8x256xf32>
    %10 = arith.negf %9 : vector<8x256xf32>
    %11 = math.exp %10 : vector<8x256xf32>
    %cst_8 = arith.constant 1.000000e+00 : f32
    %12 = vector.broadcast %cst_8 : f32 to vector<8x256xf32>
    %13 = arith.addf %12, %11 : vector<8x256xf32>
    %14 = arith.divf %12, %13 : vector<8x256xf32>
    %15 = vector.extract_strided_slice %14 {offsets = [0, 0], sizes = [8, 128], strides = [1, 1]} : vector<8x256xf32> to vector<8x128xf32>
    %16 = vector.extract_strided_slice %14 {offsets = [0, 128], sizes = [8, 128], strides = [1, 1]} : vector<8x256xf32> to vector<8x128xf32>
    %17 = vector.extract_strided_slice %4 {offsets = [0, 256], sizes = [8, 128], strides = [1, 1]} : vector<8x384xf32> to vector<8x128xf32>
    %18 = vector.extract_strided_slice %6 {offsets = [0, 256], sizes = [8, 128], strides = [1, 1]} : vector<8x384xf32> to vector<8x128xf32>
    %19 = arith.addf %18, %1 : vector<8x128xf32>
    %20 = arith.mulf %15, %19 : vector<8x128xf32>
    %21 = arith.addf %17, %20 : vector<8x128xf32>
    %22 = math.tanh %21 : vector<8x128xf32>
    %23 = arith.subf %2, %22 : vector<8x128xf32>
    %24 = arith.mulf %16, %23 : vector<8x128xf32>
    %25 = arith.addf %22, %24 : vector<8x128xf32>
    %c0_9 = arith.constant 0 : index
    %c0_10 = arith.constant 0 : index
    %c0_11 = arith.constant 0 : index
    %26 = vector.load %arg4[%c0_9, %c0_10, %c0_11] : memref<8x8x128xf32, #tpu.memory_space<vmem>>, vector<1x8x128xf32>
    %27 = vector.shape_cast %26 : vector<1x8x128xf32> to vector<8x128xf32>
    %28 = arith.mulf %27, %25 : vector<8x128xf32>
    %c0_12 = arith.constant 0 : index
    %c0_13 = arith.constant 0 : index
    %29 = vector.load %arg5[%c0_12, %c0_13] : memref<8x1024xf32, #tpu.memory_space<vmem>>, vector<8x128xf32>
    tpu.vector_store %arg5[%c0_12, %c0_13], %28 {strides = array<i32>} : memref<8x1024xf32, #tpu.memory_space<vmem>>, vector<8x128xf32>,
    %cst_14 = arith.constant 1.000000e+00 : f32
    %30 = vector.broadcast %cst_14 : f32 to vector<8x128xf32>
    %31 = arith.subf %30, %27 : vector<8x128xf32>
    %32 = arith.mulf %31, %2 : vector<8x128xf32>
    %33 = arith.addf %28, %32 : vector<8x128xf32>
    %c1 = arith.constant 1 : index
    %c0_15 = arith.constant 0 : index
    %c0_16 = arith.constant 0 : index
    %34 = vector.load %arg0[%c1, %c0_15, %c0_16] : memref<8x8x384xf32, #tpu.memory_space<vmem>>, vector<1x8x384xf32>
    %35 = vector.shape_cast %34 : vector<1x8x384xf32> to vector<8x384xf32>
    %36 = vector.extract_strided_slice %33 {offsets = [0, 0], sizes = [8, 32], strides = [1, 1]} : vector<8x128xf32> to vector<8x32xf32>
    %cst_17 = arith.constant dense<0.000000e+00> : vector<8x384xf32>
    %37 = tpu.matmul %36, %0, %cst_17 {dimension_numbers = #tpu.dot_dimension_numbers<[1], [0], [0], [1], [0, 0, 1, 1], [], []>} : vector<8x32xf32>, vector<32x384xf32>, vector<8x384xf32> -> vector<8x384xf32>
    %38 = vector.extract_strided_slice %35 {offsets = [0, 0], sizes = [8, 256], strides = [1, 1]} : vector<8x384xf32> to vector<8x256xf32>
    %39 = vector.extract_strided_slice %37 {offsets = [0, 0], sizes = [8, 256], strides = [1, 1]} : vector<8x384xf32> to vector<8x256xf32>
    %40 = arith.addf %38, %39 : vector<8x256xf32>
    %41 = arith.negf %40 : vector<8x256xf32>
    %42 = math.exp %41 : vector<8x256xf32>
    %cst_18 = arith.constant 1.000000e+00 : f32
    %43 = vector.broadcast %cst_18 : f32 to vector<8x256xf32>
    %44 = arith.addf %43, %42 : vector<8x256xf32>
    %45 = arith.divf %43, %44 : vector<8x256xf32>
    %46 = vector.extract_strided_slice %45 {offsets = [0, 0], sizes = [8, 128], strides = [1, 1]} : vector<8x256xf32> to vector<8x128xf32>
    %47 = vector.extract_strided_slice %45 {offsets = [0, 128], sizes = [8, 128], strides = [1, 1]} : vector<8x256xf32> to vector<8x128xf32>
    %48 = vector.extract_strided_slice %35 {offsets = [0, 256], sizes = [8, 128], strides = [1, 1]} : vector<8x384xf32> to vector<8x128xf32>
    %49 = vector.extract_strided_slice %37 {offsets = [0, 256], sizes = [8, 128], strides = [1, 1]} : vector<8x384xf32> to vector<8x128xf32>
    %50 = arith.addf %49, %1 : vector<8x128xf32>
    %51 = arith.mulf %46, %50 : vector<8x128xf32>
    %52 = arith.addf %48, %51 : vector<8x128xf32>
    %53 = math.tanh %52 : vector<8x128xf32>
    %54 = arith.subf %33, %53 : vector<8x128xf32>
    %55 = arith.mulf %47, %54 : vector<8x128xf32>
    %56 = arith.addf %53, %55 : vector<8x128xf32>
    %c1_19 = arith.constant 1 : index
    %c0_20 = arith.constant 0 : index
    %c0_21 = arith.constant 0 : index
    %57 = vector.load %arg4[%c1_19, %c0_20, %c0_21] : memref<8x8x128xf32, #tpu.memory_space<vmem>>, vector<1x8x128xf32>
    %58 = vector.shape_cast %57 : vector<1x8x128xf32> to vector<8x128xf32>
    %59 = arith.mulf %58, %56 : vector<8x128xf32>
    %c0_22 = arith.constant 0 : index
    %c128 = arith.constant 128 : index
    %60 = vector.load %arg5[%c0_22, %c128] : memref<8x1024xf32, #tpu.memory_space<vmem>>, vector<8x128xf32>
    tpu.vector_store %arg5[%c0_22, %c128], %59 {strides = array<i32>} : memref<8x1024xf32, #tpu.memory_space<vmem>>, vector<8x128xf32>,
    %cst_23 = arith.constant 1.000000e+00 : f32
    %61 = vector.broadcast %cst_23 : f32 to vector<8x128xf32>
    %62 = arith.subf %61, %58 : vector<8x128xf32>
    %63 = arith.mulf %62, %33 : vector<8x128xf32>
    %64 = arith.addf %59, %63 : vector<8x128xf32>
    %c2 = arith.constant 2 : index
    %c0_24 = arith.constant 0 : index
    %c0_25 = arith.constant 0 : index
    %65 = vector.load %arg0[%c2, %c0_24, %c0_25] : memref<8x8x384xf32, #tpu.memory_space<vmem>>, vector<1x8x384xf32>
    %66 = vector.shape_cast %65 : vector<1x8x384xf32> to vector<8x384xf32>
    %67 = vector.extract_strided_slice %64 {offsets = [0, 0], sizes = [8, 32], strides = [1, 1]} : vector<8x128xf32> to vector<8x32xf32>
    %cst_26 = arith.constant dense<0.000000e+00> : vector<8x384xf32>
    %68 = tpu.matmul %67, %0, %cst_26 {dimension_numbers = #tpu.dot_dimension_numbers<[1], [0], [0], [1], [0, 0, 1, 1], [], []>} : vector<8x32xf32>, vector<32x384xf32>, vector<8x384xf32> -> vector<8x384xf32>
    %69 = vector.extract_strided_slice %66 {offsets = [0, 0], sizes = [8, 256], strides = [1, 1]} : vector<8x384xf32> to vector<8x256xf32>
    %70 = vector.extract_strided_slice %68 {offsets = [0, 0], sizes = [8, 256], strides = [1, 1]} : vector<8x384xf32> to vector<8x256xf32>
    %71 = arith.addf %69, %70 : vector<8x256xf32>
    %72 = arith.negf %71 : vector<8x256xf32>
    %73 = math.exp %72 : vector<8x256xf32>
    %cst_27 = arith.constant 1.000000e+00 : f32
    %74 = vector.broadcast %cst_27 : f32 to vector<8x256xf32>
    %75 = arith.addf %74, %73 : vector<8x256xf32>
    %76 = arith.divf %74, %75 : vector<8x256xf32>
    %77 = vector.extract_strided_slice %76 {offsets = [0, 0], sizes = [8, 128], strides = [1, 1]} : vector<8x256xf32> to vector<8x128xf32>
    %78 = vector.extract_strided_slice %76 {offsets = [0, 128], sizes = [8, 128], strides = [1, 1]} : vector<8x256xf32> to vector<8x128xf32>
    %79 = vector.extract_strided_slice %66 {offsets = [0, 256], sizes = [8, 128], strides = [1, 1]} : vector<8x384xf32> to vector<8x128xf32>
    %80 = vector.extract_strided_slice %68 {offsets = [0, 256], sizes = [8, 128], strides = [1, 1]} : vector<8x384xf32> to vector<8x128xf32>
    %81 = arith.addf %80, %1 : vector<8x128xf32>
    %82 = arith.mulf %77, %81 : vector<8x128xf32>
    %83 = arith.addf %79, %82 : vector<8x128xf32>
    %84 = math.tanh %83 : vector<8x128xf32>
    %85 = arith.subf %64, %84 : vector<8x128xf32>
    %86 = arith.mulf %78, %85 : vector<8x128xf32>
    %87 = arith.addf %84, %86 : vector<8x128xf32>
    %c2_28 = arith.constant 2 : index
    %c0_29 = arith.constant 0 : index
    %c0_30 = arith.constant 0 : index
    %88 = vector.load %arg4[%c2_28, %c0_29, %c0_30] : memref<8x8x128xf32, #tpu.memory_space<vmem>>, vector<1x8x128xf32>
    %89 = vector.shape_cast %88 : vector<1x8x128xf32> to vector<8x128xf32>
    %90 = arith.mulf %89, %87 : vector<8x128xf32>
    %c0_31 = arith.constant 0 : index
    %c256 = arith.constant 256 : index
    %91 = vector.load %arg5[%c0_31, %c256] : memref<8x1024xf32, #tpu.memory_space<vmem>>, vector<8x128xf32>
    tpu.vector_store %arg5[%c0_31, %c256], %90 {strides = array<i32>} : memref<8x1024xf32, #tpu.memory_space<vmem>>, vector<8x128xf32>,
    %cst_32 = arith.constant 1.000000e+00 : f32
    %92 = vector.broadcast %cst_32 : f32 to vector<8x128xf32>
    %93 = arith.subf %92, %89 : vector<8x128xf32>
    %94 = arith.mulf %93, %64 : vector<8x128xf32>
    %95 = arith.addf %90, %94 : vector<8x128xf32>
    %c3 = arith.constant 3 : index
    %c0_33 = arith.constant 0 : index
    %c0_34 = arith.constant 0 : index
    %96 = vector.load %arg0[%c3, %c0_33, %c0_34] : memref<8x8x384xf32, #tpu.memory_space<vmem>>, vector<1x8x384xf32>
    %97 = vector.shape_cast %96 : vector<1x8x384xf32> to vector<8x384xf32>
    %98 = vector.extract_strided_slice %95 {offsets = [0, 0], sizes = [8, 32], strides = [1, 1]} : vector<8x128xf32> to vector<8x32xf32>
    %cst_35 = arith.constant dense<0.000000e+00> : vector<8x384xf32>
    %99 = tpu.matmul %98, %0, %cst_35 {dimension_numbers = #tpu.dot_dimension_numbers<[1], [0], [0], [1], [0, 0, 1, 1], [], []>} : vector<8x32xf32>, vector<32x384xf32>, vector<8x384xf32> -> vector<8x384xf32>
    %100 = vector.extract_strided_slice %97 {offsets = [0, 0], sizes = [8, 256], strides = [1, 1]} : vector<8x384xf32> to vector<8x256xf32>
    %101 = vector.extract_strided_slice %99 {offsets = [0, 0], sizes = [8, 256], strides = [1, 1]} : vector<8x384xf32> to vector<8x256xf32>
    %102 = arith.addf %100, %101 : vector<8x256xf32>
    %103 = arith.negf %102 : vector<8x256xf32>
    %104 = math.exp %103 : vector<8x256xf32>
    %cst_36 = arith.constant 1.000000e+00 : f32
    %105 = vector.broadcast %cst_36 : f32 to vector<8x256xf32>
    %106 = arith.addf %105, %104 : vector<8x256xf32>
    %107 = arith.divf %105, %106 : vector<8x256xf32>
    %108 = vector.extract_strided_slice %107 {offsets = [0, 0], sizes = [8, 128], strides = [1, 1]} : vector<8x256xf32> to vector<8x128xf32>
    %109 = vector.extract_strided_slice %107 {offsets = [0, 128], sizes = [8, 128], strides = [1, 1]} : vector<8x256xf32> to vector<8x128xf32>
    %110 = vector.extract_strided_slice %97 {offsets = [0, 256], sizes = [8, 128], strides = [1, 1]} : vector<8x384xf32> to vector<8x128xf32>
    %111 = vector.extract_strided_slice %99 {offsets = [0, 256], sizes = [8, 128], strides = [1, 1]} : vector<8x384xf32> to vector<8x128xf32>
    %112 = arith.addf %111, %1 : vector<8x128xf32>
    %113 = arith.mulf %108, %112 : vector<8x128xf32>
    %114 = arith.addf %110, %113 : vector<8x128xf32>
    %115 = math.tanh %114 : vector<8x128xf32>
    %116 = arith.subf %95, %115 : vector<8x128xf32>
    %117 = arith.mulf %109, %116 : vector<8x128xf32>
    %118 = arith.addf %115, %117 : vector<8x128xf32>
    %c3_37 = arith.constant 3 : index
    %c0_38 = arith.constant 0 : index
    %c0_39 = arith.constant 0 : index
    %119 = vector.load %arg4[%c3_37, %c0_38, %c0_39] : memref<8x8x128xf32, #tpu.memory_space<vmem>>, vector<1x8x128xf32>
    %120 = vector.shape_cast %119 : vector<1x8x128xf32> to vector<8x128xf32>
    %121 = arith.mulf %120, %118 : vector<8x128xf32>
    %c0_40 = arith.constant 0 : index
    %c384 = arith.constant 384 : index
    %122 = vector.load %arg5[%c0_40, %c384] : memref<8x1024xf32, #tpu.memory_space<vmem>>, vector<8x128xf32>
    tpu.vector_store %arg5[%c0_40, %c384], %121 {strides = array<i32>} : memref<8x1024xf32, #tpu.memory_space<vmem>>, vector<8x128xf32>,
    %cst_41 = arith.constant 1.000000e+00 : f32
    %123 = vector.broadcast %cst_41 : f32 to vector<8x128xf32>
    %124 = arith.subf %123, %120 : vector<8x128xf32>
    %125 = arith.mulf %124, %95 : vector<8x128xf32>
    %126 = arith.addf %121, %125 : vector<8x128xf32>
    %c4 = arith.constant 4 : index
    %c0_42 = arith.constant 0 : index
    %c0_43 = arith.constant 0 : index
    %127 = vector.load %arg0[%c4, %c0_42, %c0_43] : memref<8x8x384xf32, #tpu.memory_space<vmem>>, vector<1x8x384xf32>
    %128 = vector.shape_cast %127 : vector<1x8x384xf32> to vector<8x384xf32>
    %129 = vector.extract_strided_slice %126 {offsets = [0, 0], sizes = [8, 32], strides = [1, 1]} : vector<8x128xf32> to vector<8x32xf32>
    %cst_44 = arith.constant dense<0.000000e+00> : vector<8x384xf32>
    %130 = tpu.matmul %129, %0, %cst_44 {dimension_numbers = #tpu.dot_dimension_numbers<[1], [0], [0], [1], [0, 0, 1, 1], [], []>} : vector<8x32xf32>, vector<32x384xf32>, vector<8x384xf32> -> vector<8x384xf32>
    %131 = vector.extract_strided_slice %128 {offsets = [0, 0], sizes = [8, 256], strides = [1, 1]} : vector<8x384xf32> to vector<8x256xf32>
    %132 = vector.extract_strided_slice %130 {offsets = [0, 0], sizes = [8, 256], strides = [1, 1]} : vector<8x384xf32> to vector<8x256xf32>
    %133 = arith.addf %131, %132 : vector<8x256xf32>
    %134 = arith.negf %133 : vector<8x256xf32>
    %135 = math.exp %134 : vector<8x256xf32>
    %cst_45 = arith.constant 1.000000e+00 : f32
    %136 = vector.broadcast %cst_45 : f32 to vector<8x256xf32>
    %137 = arith.addf %136, %135 : vector<8x256xf32>
    %138 = arith.divf %136, %137 : vector<8x256xf32>
    %139 = vector.extract_strided_slice %138 {offsets = [0, 0], sizes = [8, 128], strides = [1, 1]} : vector<8x256xf32> to vector<8x128xf32>
    %140 = vector.extract_strided_slice %138 {offsets = [0, 128], sizes = [8, 128], strides = [1, 1]} : vector<8x256xf32> to vector<8x128xf32>
    %141 = vector.extract_strided_slice %128 {offsets = [0, 256], sizes = [8, 128], strides = [1, 1]} : vector<8x384xf32> to vector<8x128xf32>
    %142 = vector.extract_strided_slice %130 {offsets = [0, 256], sizes = [8, 128], strides = [1, 1]} : vector<8x384xf32> to vector<8x128xf32>
    %143 = arith.addf %142, %1 : vector<8x128xf32>
    %144 = arith.mulf %139, %143 : vector<8x128xf32>
    %145 = arith.addf %141, %144 : vector<8x128xf32>
    %146 = math.tanh %145 : vector<8x128xf32>
    %147 = arith.subf %126, %146 : vector<8x128xf32>
    %148 = arith.mulf %140, %147 : vector<8x128xf32>
    %149 = arith.addf %146, %148 : vector<8x128xf32>
    %c4_46 = arith.constant 4 : index
    %c0_47 = arith.constant 0 : index
    %c0_48 = arith.constant 0 : index
    %150 = vector.load %arg4[%c4_46, %c0_47, %c0_48] : memref<8x8x128xf32, #tpu.memory_space<vmem>>, vector<1x8x128xf32>
    %151 = vector.shape_cast %150 : vector<1x8x128xf32> to vector<8x128xf32>
    %152 = arith.mulf %151, %149 : vector<8x128xf32>
    %c0_49 = arith.constant 0 : index
    %c512 = arith.constant 512 : index
    %153 = vector.load %arg5[%c0_49, %c512] : memref<8x1024xf32, #tpu.memory_space<vmem>>, vector<8x128xf32>
    tpu.vector_store %arg5[%c0_49, %c512], %152 {strides = array<i32>} : memref<8x1024xf32, #tpu.memory_space<vmem>>, vector<8x128xf32>,
    %cst_50 = arith.constant 1.000000e+00 : f32
    %154 = vector.broadcast %cst_50 : f32 to vector<8x128xf32>
    %155 = arith.subf %154, %151 : vector<8x128xf32>
    %156 = arith.mulf %155, %126 : vector<8x128xf32>
    %157 = arith.addf %152, %156 : vector<8x128xf32>
    %c5 = arith.constant 5 : index
    %c0_51 = arith.constant 0 : index
    %c0_52 = arith.constant 0 : index
    %158 = vector.load %arg0[%c5, %c0_51, %c0_52] : memref<8x8x384xf32, #tpu.memory_space<vmem>>, vector<1x8x384xf32>
    %159 = vector.shape_cast %158 : vector<1x8x384xf32> to vector<8x384xf32>
    %160 = vector.extract_strided_slice %157 {offsets = [0, 0], sizes = [8, 32], strides = [1, 1]} : vector<8x128xf32> to vector<8x32xf32>
    %cst_53 = arith.constant dense<0.000000e+00> : vector<8x384xf32>
    %161 = tpu.matmul %160, %0, %cst_53 {dimension_numbers = #tpu.dot_dimension_numbers<[1], [0], [0], [1], [0, 0, 1, 1], [], []>} : vector<8x32xf32>, vector<32x384xf32>, vector<8x384xf32> -> vector<8x384xf32>
    %162 = vector.extract_strided_slice %159 {offsets = [0, 0], sizes = [8, 256], strides = [1, 1]} : vector<8x384xf32> to vector<8x256xf32>
    %163 = vector.extract_strided_slice %161 {offsets = [0, 0], sizes = [8, 256], strides = [1, 1]} : vector<8x384xf32> to vector<8x256xf32>
    %164 = arith.addf %162, %163 : vector<8x256xf32>
    %165 = arith.negf %164 : vector<8x256xf32>
    %166 = math.exp %165 : vector<8x256xf32>
    %cst_54 = arith.constant 1.000000e+00 : f32
    %167 = vector.broadcast %cst_54 : f32 to vector<8x256xf32>
    %168 = arith.addf %167, %166 : vector<8x256xf32>
    %169 = arith.divf %167, %168 : vector<8x256xf32>
    %170 = vector.extract_strided_slice %169 {offsets = [0, 0], sizes = [8, 128], strides = [1, 1]} : vector<8x256xf32> to vector<8x128xf32>
    %171 = vector.extract_strided_slice %169 {offsets = [0, 128], sizes = [8, 128], strides = [1, 1]} : vector<8x256xf32> to vector<8x128xf32>
    %172 = vector.extract_strided_slice %159 {offsets = [0, 256], sizes = [8, 128], strides = [1, 1]} : vector<8x384xf32> to vector<8x128xf32>
    %173 = vector.extract_strided_slice %161 {offsets = [0, 256], sizes = [8, 128], strides = [1, 1]} : vector<8x384xf32> to vector<8x128xf32>
    %174 = arith.addf %173, %1 : vector<8x128xf32>
    %175 = arith.mulf %170, %174 : vector<8x128xf32>
    %176 = arith.addf %172, %175 : vector<8x128xf32>
    %177 = math.tanh %176 : vector<8x128xf32>
    %178 = arith.subf %157, %177 : vector<8x128xf32>
    %179 = arith.mulf %171, %178 : vector<8x128xf32>
    %180 = arith.addf %177, %179 : vector<8x128xf32>
    %c5_55 = arith.constant 5 : index
    %c0_56 = arith.constant 0 : index
    %c0_57 = arith.constant 0 : index
    %181 = vector.load %arg4[%c5_55, %c0_56, %c0_57] : memref<8x8x128xf32, #tpu.memory_space<vmem>>, vector<1x8x128xf32>
    %182 = vector.shape_cast %181 : vector<1x8x128xf32> to vector<8x128xf32>
    %183 = arith.mulf %182, %180 : vector<8x128xf32>
    %c0_58 = arith.constant 0 : index
    %c640 = arith.constant 640 : index
    %184 = vector.load %arg5[%c0_58, %c640] : memref<8x1024xf32, #tpu.memory_space<vmem>>, vector<8x128xf32>
    tpu.vector_store %arg5[%c0_58, %c640], %183 {strides = array<i32>} : memref<8x1024xf32, #tpu.memory_space<vmem>>, vector<8x128xf32>,
    %cst_59 = arith.constant 1.000000e+00 : f32
    %185 = vector.broadcast %cst_59 : f32 to vector<8x128xf32>
    %186 = arith.subf %185, %182 : vector<8x128xf32>
    %187 = arith.mulf %186, %157 : vector<8x128xf32>
    %188 = arith.addf %183, %187 : vector<8x128xf32>
    %c6 = arith.constant 6 : index
    %c0_60 = arith.constant 0 : index
    %c0_61 = arith.constant 0 : index
    %189 = vector.load %arg0[%c6, %c0_60, %c0_61] : memref<8x8x384xf32, #tpu.memory_space<vmem>>, vector<1x8x384xf32>
    %190 = vector.shape_cast %189 : vector<1x8x384xf32> to vector<8x384xf32>
    %191 = vector.extract_strided_slice %188 {offsets = [0, 0], sizes = [8, 32], strides = [1, 1]} : vector<8x128xf32> to vector<8x32xf32>
    %cst_62 = arith.constant dense<0.000000e+00> : vector<8x384xf32>
    %192 = tpu.matmul %191, %0, %cst_62 {dimension_numbers = #tpu.dot_dimension_numbers<[1], [0], [0], [1], [0, 0, 1, 1], [], []>} : vector<8x32xf32>, vector<32x384xf32>, vector<8x384xf32> -> vector<8x384xf32>
    %193 = vector.extract_strided_slice %190 {offsets = [0, 0], sizes = [8, 256], strides = [1, 1]} : vector<8x384xf32> to vector<8x256xf32>
    %194 = vector.extract_strided_slice %192 {offsets = [0, 0], sizes = [8, 256], strides = [1, 1]} : vector<8x384xf32> to vector<8x256xf32>
    %195 = arith.addf %193, %194 : vector<8x256xf32>
    %196 = arith.negf %195 : vector<8x256xf32>
    %197 = math.exp %196 : vector<8x256xf32>
    %cst_63 = arith.constant 1.000000e+00 : f32
    %198 = vector.broadcast %cst_63 : f32 to vector<8x256xf32>
    %199 = arith.addf %198, %197 : vector<8x256xf32>
    %200 = arith.divf %198, %199 : vector<8x256xf32>
    %201 = vector.extract_strided_slice %200 {offsets = [0, 0], sizes = [8, 128], strides = [1, 1]} : vector<8x256xf32> to vector<8x128xf32>
    %202 = vector.extract_strided_slice %200 {offsets = [0, 128], sizes = [8, 128], strides = [1, 1]} : vector<8x256xf32> to vector<8x128xf32>
    %203 = vector.extract_strided_slice %190 {offsets = [0, 256], sizes = [8, 128], strides = [1, 1]} : vector<8x384xf32> to vector<8x128xf32>
    %204 = vector.extract_strided_slice %192 {offsets = [0, 256], sizes = [8, 128], strides = [1, 1]} : vector<8x384xf32> to vector<8x128xf32>
    %205 = arith.addf %204, %1 : vector<8x128xf32>
    %206 = arith.mulf %201, %205 : vector<8x128xf32>
    %207 = arith.addf %203, %206 : vector<8x128xf32>
    %208 = math.tanh %207 : vector<8x128xf32>
    %209 = arith.subf %188, %208 : vector<8x128xf32>
    %210 = arith.mulf %202, %209 : vector<8x128xf32>
    %211 = arith.addf %208, %210 : vector<8x128xf32>
    %c6_64 = arith.constant 6 : index
    %c0_65 = arith.constant 0 : index
    %c0_66 = arith.constant 0 : index
    %212 = vector.load %arg4[%c6_64, %c0_65, %c0_66] : memref<8x8x128xf32, #tpu.memory_space<vmem>>, vector<1x8x128xf32>
    %213 = vector.shape_cast %212 : vector<1x8x128xf32> to vector<8x128xf32>
    %214 = arith.mulf %213, %211 : vector<8x128xf32>
    %c0_67 = arith.constant 0 : index
    %c768 = arith.constant 768 : index
    %215 = vector.load %arg5[%c0_67, %c768] : memref<8x1024xf32, #tpu.memory_space<vmem>>, vector<8x128xf32>
    tpu.vector_store %arg5[%c0_67, %c768], %214 {strides = array<i32>} : memref<8x1024xf32, #tpu.memory_space<vmem>>, vector<8x128xf32>,
    %cst_68 = arith.constant 1.000000e+00 : f32
    %216 = vector.broadcast %cst_68 : f32 to vector<8x128xf32>
    %217 = arith.subf %216, %213 : vector<8x128xf32>
    %218 = arith.mulf %217, %188 : vector<8x128xf32>
    %219 = arith.addf %214, %218 : vector<8x128xf32>
    %c7 = arith.constant 7 : index
    %c0_69 = arith.constant 0 : index
    %c0_70 = arith.constant 0 : index
    %220 = vector.load %arg0[%c7, %c0_69, %c0_70] : memref<8x8x384xf32, #tpu.memory_space<vmem>>, vector<1x8x384xf32>
    %221 = vector.shape_cast %220 : vector<1x8x384xf32> to vector<8x384xf32>
    %222 = vector.extract_strided_slice %219 {offsets = [0, 0], sizes = [8, 32], strides = [1, 1]} : vector<8x128xf32> to vector<8x32xf32>
    %cst_71 = arith.constant dense<0.000000e+00> : vector<8x384xf32>
    %223 = tpu.matmul %222, %0, %cst_71 {dimension_numbers = #tpu.dot_dimension_numbers<[1], [0], [0], [1], [0, 0, 1, 1], [], []>} : vector<8x32xf32>, vector<32x384xf32>, vector<8x384xf32> -> vector<8x384xf32>
    %224 = vector.extract_strided_slice %221 {offsets = [0, 0], sizes = [8, 256], strides = [1, 1]} : vector<8x384xf32> to vector<8x256xf32>
    %225 = vector.extract_strided_slice %223 {offsets = [0, 0], sizes = [8, 256], strides = [1, 1]} : vector<8x384xf32> to vector<8x256xf32>
    %226 = arith.addf %224, %225 : vector<8x256xf32>
    %227 = arith.negf %226 : vector<8x256xf32>
    %228 = math.exp %227 : vector<8x256xf32>
    %cst_72 = arith.constant 1.000000e+00 : f32
    %229 = vector.broadcast %cst_72 : f32 to vector<8x256xf32>
    %230 = arith.addf %229, %228 : vector<8x256xf32>
    %231 = arith.divf %229, %230 : vector<8x256xf32>
    %232 = vector.extract_strided_slice %231 {offsets = [0, 0], sizes = [8, 128], strides = [1, 1]} : vector<8x256xf32> to vector<8x128xf32>
    %233 = vector.extract_strided_slice %231 {offsets = [0, 128], sizes = [8, 128], strides = [1, 1]} : vector<8x256xf32> to vector<8x128xf32>
    %234 = vector.extract_strided_slice %221 {offsets = [0, 256], sizes = [8, 128], strides = [1, 1]} : vector<8x384xf32> to vector<8x128xf32>
    %235 = vector.extract_strided_slice %223 {offsets = [0, 256], sizes = [8, 128], strides = [1, 1]} : vector<8x384xf32> to vector<8x128xf32>
    %236 = arith.addf %235, %1 : vector<8x128xf32>
    %237 = arith.mulf %232, %236 : vector<8x128xf32>
    %238 = arith.addf %234, %237 : vector<8x128xf32>
    %239 = math.tanh %238 : vector<8x128xf32>
    %240 = arith.subf %219, %239 : vector<8x128xf32>
    %241 = arith.mulf %233, %240 : vector<8x128xf32>
    %242 = arith.addf %239, %241 : vector<8x128xf32>
    %c7_73 = arith.constant 7 : index
    %c0_74 = arith.constant 0 : index
    %c0_75 = arith.constant 0 : index
    %243 = vector.load %arg4[%c7_73, %c0_74, %c0_75] : memref<8x8x128xf32, #tpu.memory_space<vmem>>, vector<1x8x128xf32>
    %244 = vector.shape_cast %243 : vector<1x8x128xf32> to vector<8x128xf32>
    %245 = arith.mulf %244, %242 : vector<8x128xf32>
    %c0_76 = arith.constant 0 : index
    %c896 = arith.constant 896 : index
    %246 = vector.load %arg5[%c0_76, %c896] : memref<8x1024xf32, #tpu.memory_space<vmem>>, vector<8x128xf32>
    tpu.vector_store %arg5[%c0_76, %c896], %245 {strides = array<i32>} : memref<8x1024xf32, #tpu.memory_space<vmem>>, vector<8x128xf32>,
    %cst_77 = arith.constant 1.000000e+00 : f32
    %247 = vector.broadcast %cst_77 : f32 to vector<8x128xf32>
    %248 = arith.subf %247, %244 : vector<8x128xf32>
    %249 = arith.mulf %248, %219 : vector<8x128xf32>
    %250 = arith.addf %245, %249 : vector<8x128xf32>
    %c0_78 = arith.constant 0 : index
    %c0_79 = arith.constant 0 : index
    %251 = vector.load %arg6[%c0_78, %c0_79] : memref<8x128xf32, #tpu.memory_space<vmem>>, vector<8x128xf32>
    tpu.vector_store %arg6[%c0_78, %c0_79], %250 {strides = array<i32>} : memref<8x128xf32, #tpu.memory_space<vmem>>, vector<8x128xf32>,
    return
  }
}

</mosaic_0001>

<llo_original>
// kernel: tpu_custom_call.1
$region0: #{tpu_custom_call.1}
  #allocation0 [shape = 'u32[]', space=smem, size = 0x4, offset = 0x4, fixed_abs, tag = 'smem constant byte address 0x4 - core index']
  #allocation1 [shape = 'u32[72,128]{1,0:T(1,128)}', space=vmem, size = 0x9000, scoped, tag = 'internal scratch']
  %s0 = inlined_call_operand.hbm [shape: f32[8,8,384], index: 0, kind: input, shape index: {}]
  %s1 = inlined_call_operand.hbm [shape: f32[8,128], index: 1, kind: input, shape index: {}]
  %s2 = inlined_call_operand.hbm [shape: f32[32,384], index: 2, kind: input, shape index: {}]
  %s3 = inlined_call_operand.hbm [shape: f32[8,128], index: 3, kind: input, shape index: {}]
  %s4 = inlined_call_operand.hbm [shape: f32[8,8,128], index: 4, kind: input, shape index: {}]
  %s5 = inlined_call_operand.hbm [shape: f32[8,1024], index: 5, kind: output, shape index: {0}]
  %s6 = inlined_call_operand.hbm [shape: f32[8,128], index: 6, kind: output, shape index: {1}]
  %7 = xla_tuple %s5, %s6
  %s8 = sld [smem:[#allocation0]]
  $region58: #{tpu_custom_call.1} parent=0
    _
  %s10 = ssub.s32 1, %s8
  %s11 = scalar_select 0, %s10, %s8
  $region1: #{tpu_custom_call.1} parent=0
    #allocation2 [shape = 'u8[98304]{0}', space=vmem, size = 0x18000, scoped, tag = 'input window, operand 0, single buffered']
    #allocation3 [shape = 's32[1]{0}', space=sflag, size = 0x4, scoped, tag = 'scoped memory for tpu_custom_call.1']
    #allocation4 [shape = 's32[1]{0}', space=sflag, size = 0x4, scoped, tag = 'scoped memory for tpu_custom_call.1']
    #allocation5 [shape = 'u8[4096]{0}', space=vmem, size = 0x1000, scoped, tag = 'input window, operand 1, single buffered']
    #allocation6 [shape = 's32[1]{0}', space=sflag, size = 0x4, scoped, tag = 'scoped memory for tpu_custom_call.1']
    #allocation7 [shape = 'u8[49152]{0}', space=vmem, size = 0xc000, scoped, tag = 'input window, operand 2, single buffered']
    #allocation8 [shape = 'u8[4096]{0}', space=vmem, size = 0x1000, scoped, tag = 'input window, operand 3, single buffered']
    #allocation9 [shape = 's32[1]{0}', space=sflag, size = 0x4, scoped, tag = 'scoped memory for tpu_custom_call.1']
    #allocation10 [shape = 'u8[32768]{0}', space=vmem, size = 0x8000, scoped, tag = 'input window, operand 4, single buffered']
    #allocation11 [shape = 'u8[32768]{0}', space=vmem, size = 0x8000, scoped, tag = 'output window, operand 0, single buffered']
    #allocation12 [shape = 'u8[4096]{0}', space=vmem, size = 0x1000, scoped, tag = 'output window, operand 1, single buffered']
    #allocation13 [shape = 's32[1]{0}', space=sflag, size = 0x4, scoped, tag = 'scoped memory for tpu_custom_call.1']
    %12 = vsyncpa [#allocation3], 0
    %13 = vsyncpa [#allocation6], 0
    %14 = vsyncpa [#allocation9], 0
    %15 = vsyncpa [#allocation4], 0
    %16 = vsyncpa [#allocation13], 0
    // Predicated region
    $region2: #{tpu_custom_call.1} parent=1 // pred_check
      _
    $region3: #{tpu_custom_call.1} parent=1 // pred_check_branch
      %18 = sbr.rel (0) target = $region5
    $region4: #{tpu_custom_call.1} parent=1 // pred_region
      %20 = vsyncadd [#allocation3], 0
      %s21 = sshll.u32 %s0, 4
      %s22 = int_to_ptr.hbm [resolvable:$true] %s21
      %s23 = sshll.u32 [#allocation2], 4
      %s24 = int_to_ptr.vmem [resolvable:$true] %s23
      %29 = dma.hbm_to_vmem [thread:$0]  %s22, 3072, %s24, [#allocation3], 384, 384, 24
    $region5: #{tpu_custom_call.1} parent=1 // pred_fallthru
      _
    // Predicated region
    $region6: #{tpu_custom_call.1} parent=1 // pred_check
      _
    $region7: #{tpu_custom_call.1} parent=1 // pred_check_branch
      %31 = sbr.rel (0) target = $region9
    $region8: #{tpu_custom_call.1} parent=1 // pred_region
      %33 = vsyncadd [#allocation6], 0
      %s35 = sshll.u32 %s1, 4
      %s36 = int_to_ptr.hbm [resolvable:$true] %s35
      %s37 = sshll.u32 [#allocation5], 4
      %s38 = int_to_ptr.vmem [resolvable:$true] %s37
      %40 = dma.hbm_to_vmem [thread:$0]  %s36, 128, %s38, [#allocation6]
    $region9: #{tpu_custom_call.1} parent=1 // pred_fallthru
      _
    // Predicated region
    $region10: #{tpu_custom_call.1} parent=1 // pred_check
      _
    $region11: #{tpu_custom_call.1} parent=1 // pred_check_branch
      %42 = sbr.rel (0) target = $region13
    $region12: #{tpu_custom_call.1} parent=1 // pred_region
      %44 = vsyncadd [#allocation6], 0
      %s45 = sshll.u32 %s2, 4
      %s46 = int_to_ptr.hbm [resolvable:$true] %s45
      %s47 = sshll.u32 [#allocation7], 4
      %s48 = int_to_ptr.vmem [resolvable:$true] %s47
      %53 = dma.hbm_to_vmem [thread:$0]  %s46, 1536, %s48, [#allocation6], 384, 384, 24
    $region13: #{tpu_custom_call.1} parent=1 // pred_fallthru
      _
    // Predicated region
    $region14: #{tpu_custom_call.1} parent=1 // pred_check
      _
    $region15: #{tpu_custom_call.1} parent=1 // pred_check_branch
      %55 = sbr.rel (0) target = $region17
    $region16: #{tpu_custom_call.1} parent=1 // pred_region
      %57 = vsyncadd [#allocation9], 0
      %s59 = sshll.u32 %s3, 4
      %s60 = int_to_ptr.hbm [resolvable:$true] %s59
      %s61 = sshll.u32 [#allocation8], 4
      %s62 = int_to_ptr.vmem [resolvable:$true] %s61
      %64 = dma.hbm_to_vmem [thread:$0]  %s60, 128, %s62, [#allocation9]
    $region17: #{tpu_custom_call.1} parent=1 // pred_fallthru
      _
    // Predicated region
    $region18: #{tpu_custom_call.1} parent=1 // pred_check
      _
    $region19: #{tpu_custom_call.1} parent=1 // pred_check_branch
      %66 = sbr.rel (0) target = $region21
    $region20: #{tpu_custom_call.1} parent=1 // pred_region
      %68 = vsyncadd [#allocation9], 0
      %s69 = sshll.u32 %s4, 4
      %s70 = int_to_ptr.hbm [resolvable:$true] %s69
      %s71 = sshll.u32 [#allocation10], 4
      %s72 = int_to_ptr.vmem [resolvable:$true] %s71
      %77 = dma.hbm_to_vmem [thread:$0]  %s70, 1024, %s72, [#allocation9], 128, 128, 8
    $region21: #{tpu_custom_call.1} parent=1 // pred_fallthru
      _
    // Predicated region
    $region22: #{tpu_custom_call.1} parent=1 // pred_check
      _
    $region23: #{tpu_custom_call.1} parent=1 // pred_check_branch
      %79 = sbr.rel (0) target = $region25
    $region24: #{tpu_custom_call.1} parent=1 // pred_region
      %81 = dma.done [#allocation3], 3072
    $region25: #{tpu_custom_call.1} parent=1 // pred_fallthru
      _
    // Predicated region
    $region26: #{tpu_custom_call.1} parent=1 // pred_check
      _
    $region27: #{tpu_custom_call.1} parent=1 // pred_check_branch
      %83 = sbr.rel (0) target = $region29
    $region28: #{tpu_custom_call.1} parent=1 // pred_region
      %85 = dma.done [#allocation6], 128
    $region29: #{tpu_custom_call.1} parent=1 // pred_fallthru
      _
    // Predicated region
    $region30: #{tpu_custom_call.1} parent=1 // pred_check
      _
    $region31: #{tpu_custom_call.1} parent=1 // pred_check_branch
      %87 = sbr.rel (0) target = $region33
    $region32: #{tpu_custom_call.1} parent=1 // pred_region
      %89 = dma.done [#allocation6], 1536
    $region33: #{tpu_custom_call.1} parent=1 // pred_fallthru
      _
    // Predicated region
    $region34: #{tpu_custom_call.1} parent=1 // pred_check
      _
    $region35: #{tpu_custom_call.1} parent=1 // pred_check_branch
      %91 = sbr.rel (0) target = $region37
    $region36: #{tpu_custom_call.1} parent=1 // pred_region
      %93 = dma.done [#allocation9], 128
    $region37: #{tpu_custom_call.1} parent=1 // pred_fallthru
      _
    // Predicated region
    $region38: #{tpu_custom_call.1} parent=1 // pred_check
      _
    $region39: #{tpu_custom_call.1} parent=1 // pred_check_branch
      %95 = sbr.rel (0) target = $region41
    $region40: #{tpu_custom_call.1} parent=1 // pred_region
      %97 = dma.done [#allocation9], 1024
    $region41: #{tpu_custom_call.1} parent=1 // pred_fallthru
      _
    %v98 = vld [vmem:[#allocation7] sm:$0xff]
    %v99 = vld [vmem:[#allocation7 + $0x8] sm:$0xff]
    %v100 = vld [vmem:[#allocation7 + $0x10] sm:$0xff]
    %v101 = vld [vmem:[#allocation7 + $0x18] sm:$0xff]
    %v102 = vld [vmem:[#allocation7 + $0x20] sm:$0xff]
    %v103 = vld [vmem:[#allocation7 + $0x28] sm:$0xff]
    %v104 = vld [vmem:[#allocation7 + $0x30] sm:$0xff]
    %v105 = vld [vmem:[#allocation7 + $0x38] sm:$0xff]
    %v106 = vld [vmem:[#allocation7 + $0x40] sm:$0xff]
    %v107 = vld [vmem:[#allocation7 + $0x48] sm:$0xff]
    %v108 = vld [vmem:[#allocation7 + $0x50] sm:$0xff]
    %v109 = vld [vmem:[#allocation7 + $0x58] sm:$0xff]
    %v110 = vld [vmem:[#allocation8] sm:$0xff]
    %v111 = vld [vmem:[#allocation5] sm:$0xff]
    %v112 = vld [vmem:[#allocation2] sm:$0xff]
    %v113 = vld [vmem:[#allocation2 + $0x8] sm:$0xff]
    %v114 = vld [vmem:[#allocation2 + $0x10] sm:$0xff]
    %vm115 = vcmask 261120
    %v117 = vsel %vm115, %v111, 0
    %119 = vmatpush.msra.mxu0 0.0
    %120 = vmatpush.msra.mxu0 0.0
    %121 = vmatpush.msra.mxu0 0.0
    %122 = vmatpush.msra.mxu0 0.0
    %123 = vmatpush.msra.mxu0 0.0
    %124 = vmatpush.msra.mxu0 0.0
    %125 = vmatpush.msra.mxu0 0.0
    %126 = vmatpush.msra.mxu0 0.0
    %127 = vmatpush.msra.mxu0 0.0
    %128 = vmatpush.msra.mxu0 0.0
    %129 = vmatpush.msra.mxu0 0.0
    %130 = vmatpush.msra.mxu0 0.0
    %131 = vmatpush.msra.mxu0 %v107
    %132 = vmatpush.msra.mxu0 %v104
    %133 = vmatpush.msra.mxu0 %v101
    %134 = vmatpush.msra.mxu0 %v98
    %135 = vmatmul.f32.gmra.mxu0 %v117
    %v136 = vpop.f32.mrf.mxu0
    %v137 = vadd.f32 0.0, %v136
    %138 = vdwg.mxu0
    %139 = vmatpush.msra.mxu0 0.0
    %140 = vmatpush.msra.mxu0 0.0
    %141 = vmatpush.msra.mxu0 0.0
    %142 = vmatpush.msra.mxu0 0.0
    %143 = vmatpush.msra.mxu0 0.0
    %144 = vmatpush.msra.mxu0 0.0
    %145 = vmatpush.msra.mxu0 0.0
    %146 = vmatpush.msra.mxu0 0.0
    %147 = vmatpush.msra.mxu0 0.0
    %148 = vmatpush.msra.mxu0 0.0
    %149 = vmatpush.msra.mxu0 0.0
    %150 = vmatpush.msra.mxu0 0.0
    %151 = vmatpush.msra.mxu0 %v108
    %152 = vmatpush.msra.mxu0 %v105
    %153 = vmatpush.msra.mxu0 %v102
    %154 = vmatpush.msra.mxu0 %v99
    %155 = vmatmul.f32.gmra.mxu0 %v117
    %v156 = vpop.f32.mrf.mxu0
    %v157 = vadd.f32 0.0, %v156
    %158 = vdwg.mxu0
    %159 = vmatpush.msra.mxu0 0.0
    %160 = vmatpush.msra.mxu0 0.0
    %161 = vmatpush.msra.mxu0 0.0
    %162 = vmatpush.msra.mxu0 0.0
    %163 = vmatpush.msra.mxu0 0.0
    %164 = vmatpush.msra.mxu0 0.0
    %165 = vmatpush.msra.mxu0 0.0
    %166 = vmatpush.msra.mxu0 0.0
    %167 = vmatpush.msra.mxu0 0.0
    %168 = vmatpush.msra.mxu0 0.0
    %169 = vmatpush.msra.mxu0 0.0
    %170 = vmatpush.msra.mxu0 0.0
    %171 = vmatpush.msra.mxu0 %v109
    %172 = vmatpush.msra.mxu0 %v106
    %173 = vmatpush.msra.mxu0 %v103
    %174 = vmatpush.msra.mxu0 %v100
    %175 = vmatmul.f32.gmra.mxu0 %v117
    %v176 = vpop.f32.mrf.mxu0
    %v177 = vadd.f32 0.0, %v176
    %178 = vdwg.mxu0
    %v179 = vadd.f32 %v112, %v137
    %v180 = vadd.f32 %v113, %v157
    %v181 = vxor.u32 %v179, 2147483648
    %v182 = vxor.u32 %v180, 2147483648
    %v183 = vmul.f32 %v181, 1.442695
    %v184 = vpow.pop %v183
    %v185 = vmul.f32 %v182, 1.442695
    %v186 = vpow.pop %v185
    %v187 = vadd.f32 %v184, 1.0
    %v188 = vadd.f32 %v186, 1.0
    %v189 = vrcp.pop %v187
    %v190 = vmul.f32 %v187, %v189
    %v191 = vsub.f32 1.0, %v190
    %v192 = vmul.f32 %v189, %v191
    %v193 = vadd.f32 %v189, %v192
    %vm194 = vweird.f32 %v187
    %vm195 = vweird.f32 %v189
    %vm196 = vmor %vm194, %vm195
    %v197 = vsel %vm196, %v189, %v193
    %v198 = vand.u32 2147483647, %v187
    %vm199 = vcmp.eq.f32.partialorder %v198, 8.507059e+37
    %v200 = vand.u32 %v187, 2147483648
    %v201 = vor.u32 1.1754944e-38, %v200
    %v202 = vsel %vm199, %v201, %v197
    %v203 = vmul.f32 1.0, %v202
    %v204 = vrcp.pop %v188
    %v205 = vmul.f32 %v188, %v204
    %v206 = vsub.f32 1.0, %v205
    %v207 = vmul.f32 %v204, %v206
    %v208 = vadd.f32 %v204, %v207
    %vm209 = vweird.f32 %v188
    %vm210 = vweird.f32 %v204
    %vm211 = vmor %vm209, %vm210
    %v212 = vsel %vm211, %v204, %v208
    %v213 = vand.u32 2147483647, %v188
    %vm214 = vcmp.eq.f32.partialorder %v213, 8.507059e+37
    %v215 = vand.u32 %v188, 2147483648
    %v216 = vor.u32 1.1754944e-38, %v215
    %v217 = vsel %vm214, %v216, %v212
    %v218 = vmul.f32 1.0, %v217
    %v219 = vadd.f32 %v177, %v110
    %v220 = vmul.f32 %v203, %v219
    %v221 = vadd.f32 %v114, %v220
    %v222 = vtanh.pop %v221
    %v223 = vsub.f32 %v111, %v222
    %v224 = vmul.f32 %v218, %v223
    %v225 = vadd.f32 %v222, %v224
    %v226 = vld [vmem:[#allocation10] sm:$0xff]
    %v227 = vmul.f32 %v226, %v225
    %228 = vst [vmem:[#allocation11] sm:$0xff] %v227
    %v229 = vsub.f32 1.0, %v226
    %v230 = vmul.f32 %v229, %v111
    %v231 = vadd.f32 %v227, %v230
    %s232 = scalar_lea.vmem [#allocation2], 24
    %v233 = vld [vmem:[%s232] sm:$0xff]
    %v234 = vld [vmem:[%s232 + $0x8] sm:$0xff]
    %v235 = vld [vmem:[%s232 + $0x10] sm:$0xff]
    %v237 = vsel %vm115, %v231, 0
    %239 = vmatpush.msra.mxu0 0.0
    %240 = vmatpush.msra.mxu0 0.0
    %241 = vmatpush.msra.mxu0 0.0
    %242 = vmatpush.msra.mxu0 0.0
    %243 = vmatpush.msra.mxu0 0.0
    %244 = vmatpush.msra.mxu0 0.0
    %245 = vmatpush.msra.mxu0 0.0
    %246 = vmatpush.msra.mxu0 0.0
    %247 = vmatpush.msra.mxu0 0.0
    %248 = vmatpush.msra.mxu0 0.0
    %249 = vmatpush.msra.mxu0 0.0
    %250 = vmatpush.msra.mxu0 0.0
    %251 = vmatpush.msra.mxu0 %v107
    %252 = vmatpush.msra.mxu0 %v104
    %253 = vmatpush.msra.mxu0 %v101
    %254 = vmatpush.msra.mxu0 %v98
    %255 = vmatmul.f32.gmra.mxu0 %v237
    %v256 = vpop.f32.mrf.mxu0
    %v257 = vadd.f32 0.0, %v256
    %258 = vdwg.mxu0
    %259 = vmatpush.msra.mxu0 0.0
    %260 = vmatpush.msra.mxu0 0.0
    %261 = vmatpush.msra.mxu0 0.0
    %262 = vmatpush.msra.mxu0 0.0
    %263 = vmatpush.msra.mxu0 0.0
    %264 = vmatpush.msra.mxu0 0.0
    %265 = vmatpush.msra.mxu0 0.0
    %266 = vmatpush.msra.mxu0 0.0
    %267 = vmatpush.msra.mxu0 0.0
    %268 = vmatpush.msra.mxu0 0.0
    %269 = vmatpush.msra.mxu0 0.0
    %270 = vmatpush.msra.mxu0 0.0
    %271 = vmatpush.msra.mxu0 %v108
    %272 = vmatpush.msra.mxu0 %v105
    %273 = vmatpush.msra.mxu0 %v102
    %274 = vmatpush.msra.mxu0 %v99
    %275 = vmatmul.f32.gmra.mxu0 %v237
    %v276 = vpop.f32.mrf.mxu0
    %v277 = vadd.f32 0.0, %v276
    %278 = vdwg.mxu0
    %279 = vmatpush.msra.mxu0 0.0
    %280 = vmatpush.msra.mxu0 0.0
    %281 = vmatpush.msra.mxu0 0.0
    %282 = vmatpush.msra.mxu0 0.0
    %283 = vmatpush.msra.mxu0 0.0
    %284 = vmatpush.msra.mxu0 0.0
    %285 = vmatpush.msra.mxu0 0.0
    %286 = vmatpush.msra.mxu0 0.0
    %287 = vmatpush.msra.mxu0 0.0
    %288 = vmatpush.msra.mxu0 0.0
    %289 = vmatpush.msra.mxu0 0.0
    %290 = vmatpush.msra.mxu0 0.0
    %291 = vmatpush.msra.mxu0 %v109
    %292 = vmatpush.msra.mxu0 %v106
    %293 = vmatpush.msra.mxu0 %v103
    %294 = vmatpush.msra.mxu0 %v100
    %295 = vmatmul.f32.gmra.mxu0 %v237
    %v296 = vpop.f32.mrf.mxu0
    %v297 = vadd.f32 0.0, %v296
    %298 = vdwg.mxu0
    %v299 = vadd.f32 %v233, %v257
    %v300 = vadd.f32 %v234, %v277
    %v301 = vxor.u32 %v299, 2147483648
    %v302 = vxor.u32 %v300, 2147483648
    %v303 = vmul.f32 %v301, 1.442695
    %v304 = vpow.pop %v303
    %v305 = vmul.f32 %v302, 1.442695
    %v306 = vpow.pop %v305
    %v307 = vadd.f32 %v304, 1.0
    %v308 = vadd.f32 %v306, 1.0
    %v309 = vrcp.pop %v307
    %v310 = vmul.f32 %v307, %v309
    %v311 = vsub.f32 1.0, %v310
    %v312 = vmul.f32 %v309, %v311
    %v313 = vadd.f32 %v309, %v312
    %vm314 = vweird.f32 %v307
    %vm315 = vweird.f32 %v309
    %vm316 = vmor %vm314, %vm315
    %v317 = vsel %vm316, %v309, %v313
    %v318 = vand.u32 2147483647, %v307
    %vm319 = vcmp.eq.f32.partialorder %v318, 8.507059e+37
    %v320 = vand.u32 %v307, 2147483648
    %v321 = vor.u32 1.1754944e-38, %v320
    %v322 = vsel %vm319, %v321, %v317
    %v323 = vmul.f32 1.0, %v322
    %v324 = vrcp.pop %v308
    %v325 = vmul.f32 %v308, %v324
    %v326 = vsub.f32 1.0, %v325
    %v327 = vmul.f32 %v324, %v326
    %v328 = vadd.f32 %v324, %v327
    %vm329 = vweird.f32 %v308
    %vm330 = vweird.f32 %v324
    %vm331 = vmor %vm329, %vm330
    %v332 = vsel %vm331, %v324, %v328
    %v333 = vand.u32 2147483647, %v308
    %vm334 = vcmp.eq.f32.partialorder %v333, 8.507059e+37
    %v335 = vand.u32 %v308, 2147483648
    %v336 = vor.u32 1.1754944e-38, %v335
    %v337 = vsel %vm334, %v336, %v332
    %v338 = vmul.f32 1.0, %v337
    %v339 = vadd.f32 %v297, %v110
    %v340 = vmul.f32 %v323, %v339
    %v341 = vadd.f32 %v235, %v340
    %v342 = vtanh.pop %v341
    %v343 = vsub.f32 %v231, %v342
    %v344 = vmul.f32 %v338, %v343
    %v345 = vadd.f32 %v342, %v344
    %s346 = scalar_lea.vmem [#allocation10], 8
    %v347 = vld [vmem:[%s346] sm:$0xff]
    %v348 = vmul.f32 %v347, %v345
    %349 = vst [vmem:[#allocation11 + $0x8] sm:$0xff] %v348
    %v350 = vsub.f32 1.0, %v347
    %v351 = vmul.f32 %v350, %v231
    %v352 = vadd.f32 %v348, %v351
    %s353 = scalar_lea.vmem [#allocation2], 48
    %v354 = vld [vmem:[%s353] sm:$0xff]
    %v355 = vld [vmem:[%s353 + $0x8] sm:$0xff]
    %v356 = vld [vmem:[%s353 + $0x10] sm:$0xff]
    %v358 = vsel %vm115, %v352, 0
    %360 = vmatpush.msra.mxu0 0.0
    %361 = vmatpush.msra.mxu0 0.0
    %362 = vmatpush.msra.mxu0 0.0
    %363 = vmatpush.msra.mxu0 0.0
    %364 = vmatpush.msra.mxu0 0.0
    %365 = vmatpush.msra.mxu0 0.0
    %366 = vmatpush.msra.mxu0 0.0
    %367 = vmatpush.msra.mxu0 0.0
    %368 = vmatpush.msra.mxu0 0.0
    %369 = vmatpush.msra.mxu0 0.0
    %370 = vmatpush.msra.mxu0 0.0
    %371 = vmatpush.msra.mxu0 0.0
    %372 = vmatpush.msra.mxu0 %v107
    %373 = vmatpush.msra.mxu0 %v104
    %374 = vmatpush.msra.mxu0 %v101
    %375 = vmatpush.msra.mxu0 %v98
    %376 = vmatmul.f32.gmra.mxu0 %v358
    %v377 = vpop.f32.mrf.mxu0
    %v378 = vadd.f32 0.0, %v377
    %379 = vdwg.mxu0
    %380 = vmatpush.msra.mxu0 0.0
    %381 = vmatpush.msra.mxu0 0.0
    %382 = vmatpush.msra.mxu0 0.0
    %383 = vmatpush.msra.mxu0 0.0
    %384 = vmatpush.msra.mxu0 0.0
    %385 = vmatpush.msra.mxu0 0.0
    %386 = vmatpush.msra.mxu0 0.0
    %387 = vmatpush.msra.mxu0 0.0
    %388 = vmatpush.msra.mxu0 0.0
    %389 = vmatpush.msra.mxu0 0.0
    %390 = vmatpush.msra.mxu0 0.0
    %391 = vmatpush.msra.mxu0 0.0
    %392 = vmatpush.msra.mxu0 %v108
    %393 = vmatpush.msra.mxu0 %v105
    %394 = vmatpush.msra.mxu0 %v102
    %395 = vmatpush.msra.mxu0 %v99
    %396 = vmatmul.f32.gmra.mxu0 %v358
    %v397 = vpop.f32.mrf.mxu0
    %v398 = vadd.f32 0.0, %v397
    %399 = vdwg.mxu0
    %400 = vmatpush.msra.mxu0 0.0
    %401 = vmatpush.msra.mxu0 0.0
    %402 = vmatpush.msra.mxu0 0.0
    %403 = vmatpush.msra.mxu0 0.0
    %404 = vmatpush.msra.mxu0 0.0
    %405 = vmatpush.msra.mxu0 0.0
    %406 = vmatpush.msra.mxu0 0.0
    %407 = vmatpush.msra.mxu0 0.0
    %408 = vmatpush.msra.mxu0 0.0
    %409 = vmatpush.msra.mxu0 0.0
    %410 = vmatpush.msra.mxu0 0.0
    %411 = vmatpush.msra.mxu0 0.0
    %412 = vmatpush.msra.mxu0 %v109
    %413 = vmatpush.msra.mxu0 %v106
    %414 = vmatpush.msra.mxu0 %v103
    %415 = vmatpush.msra.mxu0 %v100
    %416 = vmatmul.f32.gmra.mxu0 %v358
    %v417 = vpop.f32.mrf.mxu0
    %v418 = vadd.f32 0.0, %v417
    %419 = vdwg.mxu0
    %v420 = vadd.f32 %v354, %v378
    %v421 = vadd.f32 %v355, %v398
    %v422 = vxor.u32 %v420, 2147483648
    %v423 = vxor.u32 %v421, 2147483648
    %v424 = vmul.f32 %v422, 1.442695
    %v425 = vpow.pop %v424
    %v426 = vmul.f32 %v423, 1.442695
    %v427 = vpow.pop %v426
    %v428 = vadd.f32 %v425, 1.0
    %v429 = vadd.f32 %v427, 1.0
    %v430 = vrcp.pop %v428
    %v431 = vmul.f32 %v428, %v430
    %v432 = vsub.f32 1.0, %v431
    %v433 = vmul.f32 %v430, %v432
    %v434 = vadd.f32 %v430, %v433
    %vm435 = vweird.f32 %v428
    %vm436 = vweird.f32 %v430
    %vm437 = vmor %vm435, %vm436
    %v438 = vsel %vm437, %v430, %v434
    %v439 = vand.u32 2147483647, %v428
    %vm440 = vcmp.eq.f32.partialorder %v439, 8.507059e+37
    %v441 = vand.u32 %v428, 2147483648
    %v442 = vor.u32 1.1754944e-38, %v441
    %v443 = vsel %vm440, %v442, %v438
    %v444 = vmul.f32 1.0, %v443
    %v445 = vrcp.pop %v429
    %v446 = vmul.f32 %v429, %v445
    %v447 = vsub.f32 1.0, %v446
    %v448 = vmul.f32 %v445, %v447
    %v449 = vadd.f32 %v445, %v448
    %vm450 = vweird.f32 %v429
    %vm451 = vweird.f32 %v445
    %vm452 = vmor %vm450, %vm451
    %v453 = vsel %vm452, %v445, %v449
    %v454 = vand.u32 2147483647, %v429
    %vm455 = vcmp.eq.f32.partialorder %v454, 8.507059e+37
    %v456 = vand.u32 %v429, 2147483648
    %v457 = vor.u32 1.1754944e-38, %v456
    %v458 = vsel %vm455, %v457, %v453
    %v459 = vmul.f32 1.0, %v458
    %v460 = vadd.f32 %v418, %v110
    %v461 = vmul.f32 %v444, %v460
    %v462 = vadd.f32 %v356, %v461
    %v463 = vtanh.pop %v462
    %v464 = vsub.f32 %v352, %v463
    %v465 = vmul.f32 %v459, %v464
    %v466 = vadd.f32 %v463, %v465
    %s467 = scalar_lea.vmem [#allocation10], 16
    %v468 = vld [vmem:[%s467] sm:$0xff]
    %v469 = vmul.f32 %v468, %v466
    %470 = vst [vmem:[#allocation11 + $0x10] sm:$0xff] %v469
    %v471 = vsub.f32 1.0, %v468
    %v472 = vmul.f32 %v471, %v352
    %v473 = vadd.f32 %v469, %v472
    %s474 = scalar_lea.vmem [#allocation2], 72
    %v475 = vld [vmem:[%s474] sm:$0xff]
    %v476 = vld [vmem:[%s474 + $0x8] sm:$0xff]
    %v477 = vld [vmem:[%s474 + $0x10] sm:$0xff]
    %v479 = vsel %vm115, %v473, 0
    %481 = vmatpush.msra.mxu0 0.0
    %482 = vmatpush.msra.mxu0 0.0
    %483 = vmatpush.msra.mxu0 0.0
    %484 = vmatpush.msra.mxu0 0.0
    %485 = vmatpush.msra.mxu0 0.0
    %486 = vmatpush.msra.mxu0 0.0
    %487 = vmatpush.msra.mxu0 0.0
    %488 = vmatpush.msra.mxu0 0.0
    %489 = vmatpush.msra.mxu0 0.0
    %490 = vmatpush.msra.mxu0 0.0
    %491 = vmatpush.msra.mxu0 0.0
    %492 = vmatpush.msra.mxu0 0.0
    %493 = vmatpush.msra.mxu0 %v107
    %494 = vmatpush.msra.mxu0 %v104
    %495 = vmatpush.msra.mxu0 %v101
    %496 = vmatpush.msra.mxu0 %v98
    %497 = vmatmul.f32.gmra.mxu0 %v479
    %v498 = vpop.f32.mrf.mxu0
    %v499 = vadd.f32 0.0, %v498
    %500 = vdwg.mxu0
    %501 = vmatpush.msra.mxu0 0.0
    %502 = vmatpush.msra.mxu0 0.0
    %503 = vmatpush.msra.mxu0 0.0
    %504 = vmatpush.msra.mxu0 0.0
    %505 = vmatpush.msra.mxu0 0.0
    %506 = vmatpush.msra.mxu0 0.0
    %507 = vmatpush.msra.mxu0 0.0
    %508 = vmatpush.msra.mxu0 0.0
    %509 = vmatpush.msra.mxu0 0.0
    %510 = vmatpush.msra.mxu0 0.0
    %511 = vmatpush.msra.mxu0 0.0
    %512 = vmatpush.msra.mxu0 0.0
    %513 = vmatpush.msra.mxu0 %v108
    %514 = vmatpush.msra.mxu0 %v105
    %515 = vmatpush.msra.mxu0 %v102
    %516 = vmatpush.msra.mxu0 %v99
    %517 = vmatmul.f32.gmra.mxu0 %v479
    %v518 = vpop.f32.mrf.mxu0
    %v519 = vadd.f32 0.0, %v518
    %520 = vdwg.mxu0
    %521 = vmatpush.msra.mxu0 0.0
    %522 = vmatpush.msra.mxu0 0.0
    %523 = vmatpush.msra.mxu0 0.0
    %524 = vmatpush.msra.mxu0 0.0
    %525 = vmatpush.msra.mxu0 0.0
    %526 = vmatpush.msra.mxu0 0.0
    %527 = vmatpush.msra.mxu0 0.0
    %528 = vmatpush.msra.mxu0 0.0
    %529 = vmatpush.msra.mxu0 0.0
    %530 = vmatpush.msra.mxu0 0.0
    %531 = vmatpush.msra.mxu0 0.0
    %532 = vmatpush.msra.mxu0 0.0
    %533 = vmatpush.msra.mxu0 %v109
    %534 = vmatpush.msra.mxu0 %v106
    %535 = vmatpush.msra.mxu0 %v103
    %536 = vmatpush.msra.mxu0 %v100
    %537 = vmatmul.f32.gmra.mxu0 %v479
    %v538 = vpop.f32.mrf.mxu0
    %v539 = vadd.f32 0.0, %v538
    %540 = vdwg.mxu0
    %v541 = vadd.f32 %v475, %v499
    %v542 = vadd.f32 %v476, %v519
    %v543 = vxor.u32 %v541, 2147483648
    %v544 = vxor.u32 %v542, 2147483648
    %v545 = vmul.f32 %v543, 1.442695
    %v546 = vpow.pop %v545
    %v547 = vmul.f32 %v544, 1.442695
    %v548 = vpow.pop %v547
    %v549 = vadd.f32 %v546, 1.0
    %v550 = vadd.f32 %v548, 1.0
    %v551 = vrcp.pop %v549
    %v552 = vmul.f32 %v549, %v551
    %v553 = vsub.f32 1.0, %v552
    %v554 = vmul.f32 %v551, %v553
    %v555 = vadd.f32 %v551, %v554
    %vm556 = vweird.f32 %v549
    %vm557 = vweird.f32 %v551
    %vm558 = vmor %vm556, %vm557
    %v559 = vsel %vm558, %v551, %v555
    %v560 = vand.u32 2147483647, %v549
    %vm561 = vcmp.eq.f32.partialorder %v560, 8.507059e+37
    %v562 = vand.u32 %v549, 2147483648
    %v563 = vor.u32 1.1754944e-38, %v562
    %v564 = vsel %vm561, %v563, %v559
    %v565 = vmul.f32 1.0, %v564
    %v566 = vrcp.pop %v550
    %v567 = vmul.f32 %v550, %v566
    %v568 = vsub.f32 1.0, %v567
    %v569 = vmul.f32 %v566, %v568
    %v570 = vadd.f32 %v566, %v569
    %vm571 = vweird.f32 %v550
    %vm572 = vweird.f32 %v566
    %vm573 = vmor %vm571, %vm572
    %v574 = vsel %vm573, %v566, %v570
    %v575 = vand.u32 2147483647, %v550
    %vm576 = vcmp.eq.f32.partialorder %v575, 8.507059e+37
    %v577 = vand.u32 %v550, 2147483648
    %v578 = vor.u32 1.1754944e-38, %v577
    %v579 = vsel %vm576, %v578, %v574
    %v580 = vmul.f32 1.0, %v579
    %v581 = vadd.f32 %v539, %v110
    %v582 = vmul.f32 %v565, %v581
    %v583 = vadd.f32 %v477, %v582
    %v584 = vtanh.pop %v583
    %v585 = vsub.f32 %v473, %v584
    %v586 = vmul.f32 %v580, %v585
    %v587 = vadd.f32 %v584, %v586
    %s588 = scalar_lea.vmem [#allocation10], 24
    %v589 = vld [vmem:[%s588] sm:$0xff]
    %v590 = vmul.f32 %v589, %v587
    %591 = vst [vmem:[#allocation11 + $0x18] sm:$0xff] %v590
    %v592 = vsub.f32 1.0, %v589
    %v593 = vmul.f32 %v592, %v473
    %v594 = vadd.f32 %v590, %v593
    %s595 = scalar_lea.vmem [#allocation2], 96
    %v596 = vld [vmem:[%s595] sm:$0xff]
    %v597 = vld [vmem:[%s595 + $0x8] sm:$0xff]
    %v598 = vld [vmem:[%s595 + $0x10] sm:$0xff]
    %v600 = vsel %vm115, %v594, 0
    %602 = vmatpush.msra.mxu0 0.0
    %603 = vmatpush.msra.mxu0 0.0
    %604 = vmatpush.msra.mxu0 0.0
    %605 = vmatpush.msra.mxu0 0.0
    %606 = vmatpush.msra.mxu0 0.0
    %607 = vmatpush.msra.mxu0 0.0
    %608 = vmatpush.msra.mxu0 0.0
    %609 = vmatpush.msra.mxu0 0.0
    %610 = vmatpush.msra.mxu0 0.0
    %611 = vmatpush.msra.mxu0 0.0
    %612 = vmatpush.msra.mxu0 0.0
    %613 = vmatpush.msra.mxu0 0.0
    %614 = vmatpush.msra.mxu0 %v107
    %615 = vmatpush.msra.mxu0 %v104
    %616 = vmatpush.msra.mxu0 %v101
    %617 = vmatpush.msra.mxu0 %v98
    %618 = vmatmul.f32.gmra.mxu0 %v600
    %v619 = vpop.f32.mrf.mxu0
    %v620 = vadd.f32 0.0, %v619
    %621 = vdwg.mxu0
    %622 = vmatpush.msra.mxu0 0.0
    %623 = vmatpush.msra.mxu0 0.0
    %624 = vmatpush.msra.mxu0 0.0
    %625 = vmatpush.msra.mxu0 0.0
    %626 = vmatpush.msra.mxu0 0.0
    %627 = vmatpush.msra.mxu0 0.0
    %628 = vmatpush.msra.mxu0 0.0
    %629 = vmatpush.msra.mxu0 0.0
    %630 = vmatpush.msra.mxu0 0.0
    %631 = vmatpush.msra.mxu0 0.0
    %632 = vmatpush.msra.mxu0 0.0
    %633 = vmatpush.msra.mxu0 0.0
    %634 = vmatpush.msra.mxu0 %v108
    %635 = vmatpush.msra.mxu0 %v105
    %636 = vmatpush.msra.mxu0 %v102
    %637 = vmatpush.msra.mxu0 %v99
    %638 = vmatmul.f32.gmra.mxu0 %v600
    %v639 = vpop.f32.mrf.mxu0
    %v640 = vadd.f32 0.0, %v639
    %641 = vdwg.mxu0
    %642 = vmatpush.msra.mxu0 0.0
    %643 = vmatpush.msra.mxu0 0.0
    %644 = vmatpush.msra.mxu0 0.0
    %645 = vmatpush.msra.mxu0 0.0
    %646 = vmatpush.msra.mxu0 0.0
    %647 = vmatpush.msra.mxu0 0.0
    %648 = vmatpush.msra.mxu0 0.0
    %649 = vmatpush.msra.mxu0 0.0
    %650 = vmatpush.msra.mxu0 0.0
    %651 = vmatpush.msra.mxu0 0.0
    %652 = vmatpush.msra.mxu0 0.0
    %653 = vmatpush.msra.mxu0 0.0
    %654 = vmatpush.msra.mxu0 %v109
    %655 = vmatpush.msra.mxu0 %v106
    %656 = vmatpush.msra.mxu0 %v103
    %657 = vmatpush.msra.mxu0 %v100
    %658 = vmatmul.f32.gmra.mxu0 %v600
    %v659 = vpop.f32.mrf.mxu0
    %v660 = vadd.f32 0.0, %v659
    %661 = vdwg.mxu0
    %v662 = vadd.f32 %v596, %v620
    %v663 = vadd.f32 %v597, %v640
    %v664 = vxor.u32 %v662, 2147483648
    %v665 = vxor.u32 %v663, 2147483648
    %v666 = vmul.f32 %v664, 1.442695
    %v667 = vpow.pop %v666
    %v668 = vmul.f32 %v665, 1.442695
    %v669 = vpow.pop %v668
    %v670 = vadd.f32 %v667, 1.0
    %v671 = vadd.f32 %v669, 1.0
    %v672 = vrcp.pop %v670
    %v673 = vmul.f32 %v670, %v672
    %v674 = vsub.f32 1.0, %v673
    %v675 = vmul.f32 %v672, %v674
    %v676 = vadd.f32 %v672, %v675
    %vm677 = vweird.f32 %v670
    %vm678 = vweird.f32 %v672
    %vm679 = vmor %vm677, %vm678
    %v680 = vsel %vm679, %v672, %v676
    %v681 = vand.u32 2147483647, %v670
    %vm682 = vcmp.eq.f32.partialorder %v681, 8.507059e+37
    %v683 = vand.u32 %v670, 2147483648
    %v684 = vor.u32 1.1754944e-38, %v683
    %v685 = vsel %vm682, %v684, %v680
    %v686 = vmul.f32 1.0, %v685
    %v687 = vrcp.pop %v671
    %v688 = vmul.f32 %v671, %v687
    %v689 = vsub.f32 1.0, %v688
    %v690 = vmul.f32 %v687, %v689
    %v691 = vadd.f32 %v687, %v690
    %vm692 = vweird.f32 %v671
    %vm693 = vweird.f32 %v687
    %vm694 = vmor %vm692, %vm693
    %v695 = vsel %vm694, %v687, %v691
    %v696 = vand.u32 2147483647, %v671
    %vm697 = vcmp.eq.f32.partialorder %v696, 8.507059e+37
    %v698 = vand.u32 %v671, 2147483648
    %v699 = vor.u32 1.1754944e-38, %v698
    %v700 = vsel %vm697, %v699, %v695
    %v701 = vmul.f32 1.0, %v700
    %v702 = vadd.f32 %v660, %v110
    %v703 = vmul.f32 %v686, %v702
    %v704 = vadd.f32 %v598, %v703
    %v705 = vtanh.pop %v704
    %v706 = vsub.f32 %v594, %v705
    %v707 = vmul.f32 %v701, %v706
    %v708 = vadd.f32 %v705, %v707
    %s709 = scalar_lea.vmem [#allocation10], 32
    %v710 = vld [vmem:[%s709] sm:$0xff]
    %v711 = vmul.f32 %v710, %v708
    %712 = vst [vmem:[#allocation11 + $0x20] sm:$0xff] %v711
    %v713 = vsub.f32 1.0, %v710
    %v714 = vmul.f32 %v713, %v594
    %v715 = vadd.f32 %v711, %v714
    %s716 = scalar_lea.vmem [#allocation2], 120
    %v717 = vld [vmem:[%s716] sm:$0xff]
    %v718 = vld [vmem:[%s716 + $0x8] sm:$0xff]
    %v719 = vld [vmem:[%s716 + $0x10] sm:$0xff]
    %v721 = vsel %vm115, %v715, 0
    %723 = vmatpush.msra.mxu0 0.0
    %724 = vmatpush.msra.mxu0 0.0
    %725 = vmatpush.msra.mxu0 0.0
    %726 = vmatpush.msra.mxu0 0.0
    %727 = vmatpush.msra.mxu0 0.0
    %728 = vmatpush.msra.mxu0 0.0
    %729 = vmatpush.msra.mxu0 0.0
    %730 = vmatpush.msra.mxu0 0.0
    %731 = vmatpush.msra.mxu0 0.0
    %732 = vmatpush.msra.mxu0 0.0
    %733 = vmatpush.msra.mxu0 0.0
    %734 = vmatpush.msra.mxu0 0.0
    %735 = vmatpush.msra.mxu0 %v107
    %736 = vmatpush.msra.mxu0 %v104
    %737 = vmatpush.msra.mxu0 %v101
    %738 = vmatpush.msra.mxu0 %v98
    %739 = vmatmul.f32.gmra.mxu0 %v721
    %v740 = vpop.f32.mrf.mxu0
    %v741 = vadd.f32 0.0, %v740
    %742 = vdwg.mxu0
    %743 = vmatpush.msra.mxu0 0.0
    %744 = vmatpush.msra.mxu0 0.0
    %745 = vmatpush.msra.mxu0 0.0
    %746 = vmatpush.msra.mxu0 0.0
    %747 = vmatpush.msra.mxu0 0.0
    %748 = vmatpush.msra.mxu0 0.0
    %749 = vmatpush.msra.mxu0 0.0
    %750 = vmatpush.msra.mxu0 0.0
    %751 = vmatpush.msra.mxu0 0.0
    %752 = vmatpush.msra.mxu0 0.0
    %753 = vmatpush.msra.mxu0 0.0
    %754 = vmatpush.msra.mxu0 0.0
    %755 = vmatpush.msra.mxu0 %v108
    %756 = vmatpush.msra.mxu0 %v105
    %757 = vmatpush.msra.mxu0 %v102
    %758 = vmatpush.msra.mxu0 %v99
    %759 = vmatmul.f32.gmra.mxu0 %v721
    %v760 = vpop.f32.mrf.mxu0
    %v761 = vadd.f32 0.0, %v760
    %762 = vdwg.mxu0
    %763 = vmatpush.msra.mxu0 0.0
    %764 = vmatpush.msra.mxu0 0.0
    %765 = vmatpush.msra.mxu0 0.0
    %766 = vmatpush.msra.mxu0 0.0
    %767 = vmatpush.msra.mxu0 0.0
    %768 = vmatpush.msra.mxu0 0.0
    %769 = vmatpush.msra.mxu0 0.0
    %770 = vmatpush.msra.mxu0 0.0
    %771 = vmatpush.msra.mxu0 0.0
    %772 = vmatpush.msra.mxu0 0.0
    %773 = vmatpush.msra.mxu0 0.0
    %774 = vmatpush.msra.mxu0 0.0
    %775 = vmatpush.msra.mxu0 %v109
    %776 = vmatpush.msra.mxu0 %v106
    %777 = vmatpush.msra.mxu0 %v103
    %778 = vmatpush.msra.mxu0 %v100
    %779 = vmatmul.f32.gmra.mxu0 %v721
    %v780 = vpop.f32.mrf.mxu0
    %v781 = vadd.f32 0.0, %v780
    %782 = vdwg.mxu0
    %v783 = vadd.f32 %v717, %v741
    %v784 = vadd.f32 %v718, %v761
    %v785 = vxor.u32 %v783, 2147483648
    %v786 = vxor.u32 %v784, 2147483648
    %v787 = vmul.f32 %v785, 1.442695
    %v788 = vpow.pop %v787
    %v789 = vmul.f32 %v786, 1.442695
    %v790 = vpow.pop %v789
    %v791 = vadd.f32 %v788, 1.0
    %v792 = vadd.f32 %v790, 1.0
    %v793 = vrcp.pop %v791
    %v794 = vmul.f32 %v791, %v793
    %v795 = vsub.f32 1.0, %v794
    %v796 = vmul.f32 %v793, %v795
    %v797 = vadd.f32 %v793, %v796
    %vm798 = vweird.f32 %v791
    %vm799 = vweird.f32 %v793
    %vm800 = vmor %vm798, %vm799
    %v801 = vsel %vm800, %v793, %v797
    %v802 = vand.u32 2147483647, %v791
    %vm803 = vcmp.eq.f32.partialorder %v802, 8.507059e+37
    %v804 = vand.u32 %v791, 2147483648
    %v805 = vor.u32 1.1754944e-38, %v804
    %v806 = vsel %vm803, %v805, %v801
    %v807 = vmul.f32 1.0, %v806
    %v808 = vrcp.pop %v792
    %v809 = vmul.f32 %v792, %v808
    %v810 = vsub.f32 1.0, %v809
    %v811 = vmul.f32 %v808, %v810
    %v812 = vadd.f32 %v808, %v811
    %vm813 = vweird.f32 %v792
    %vm814 = vweird.f32 %v808
    %vm815 = vmor %vm813, %vm814
    %v816 = vsel %vm815, %v808, %v812
    %v817 = vand.u32 2147483647, %v792
    %vm818 = vcmp.eq.f32.partialorder %v817, 8.507059e+37
    %v819 = vand.u32 %v792, 2147483648
    %v820 = vor.u32 1.1754944e-38, %v819
    %v821 = vsel %vm818, %v820, %v816
    %v822 = vmul.f32 1.0, %v821
    %v823 = vadd.f32 %v781, %v110
    %v824 = vmul.f32 %v807, %v823
    %v825 = vadd.f32 %v719, %v824
    %v826 = vtanh.pop %v825
    %v827 = vsub.f32 %v715, %v826
    %v828 = vmul.f32 %v822, %v827
    %v829 = vadd.f32 %v826, %v828
    %s830 = scalar_lea.vmem [#allocation10], 40
    %v831 = vld [vmem:[%s830] sm:$0xff]
    %v832 = vmul.f32 %v831, %v829
    %833 = vst [vmem:[#allocation11 + $0x28] sm:$0xff] %v832
    %v834 = vsub.f32 1.0, %v831
    %v835 = vmul.f32 %v834, %v715
    %v836 = vadd.f32 %v832, %v835
    %s837 = scalar_lea.vmem [#allocation2], 144
    %v838 = vld [vmem:[%s837] sm:$0xff]
    %v839 = vld [vmem:[%s837 + $0x8] sm:$0xff]
    %v840 = vld [vmem:[%s837 + $0x10] sm:$0xff]
    %v842 = vsel %vm115, %v836, 0
    %844 = vmatpush.msra.mxu0 0.0
    %845 = vmatpush.msra.mxu0 0.0
    %846 = vmatpush.msra.mxu0 0.0
    %847 = vmatpush.msra.mxu0 0.0
    %848 = vmatpush.msra.mxu0 0.0
    %849 = vmatpush.msra.mxu0 0.0
    %850 = vmatpush.msra.mxu0 0.0
    %851 = vmatpush.msra.mxu0 0.0
    %852 = vmatpush.msra.mxu0 0.0
    %853 = vmatpush.msra.mxu0 0.0
    %854 = vmatpush.msra.mxu0 0.0
    %855 = vmatpush.msra.mxu0 0.0
    %856 = vmatpush.msra.mxu0 %v107
    %857 = vmatpush.msra.mxu0 %v104
    %858 = vmatpush.msra.mxu0 %v101
    %859 = vmatpush.msra.mxu0 %v98
    %860 = vmatmul.f32.gmra.mxu0 %v842
    %v861 = vpop.f32.mrf.mxu0
    %v862 = vadd.f32 0.0, %v861
    %863 = vdwg.mxu0
    %864 = vmatpush.msra.mxu0 0.0
    %865 = vmatpush.msra.mxu0 0.0
    %866 = vmatpush.msra.mxu0 0.0
    %867 = vmatpush.msra.mxu0 0.0
    %868 = vmatpush.msra.mxu0 0.0
    %869 = vmatpush.msra.mxu0 0.0
    %870 = vmatpush.msra.mxu0 0.0
    %871 = vmatpush.msra.mxu0 0.0
    %872 = vmatpush.msra.mxu0 0.0
    %873 = vmatpush.msra.mxu0 0.0
    %874 = vmatpush.msra.mxu0 0.0
    %875 = vmatpush.msra.mxu0 0.0
    %876 = vmatpush.msra.mxu0 %v108
    %877 = vmatpush.msra.mxu0 %v105
    %878 = vmatpush.msra.mxu0 %v102
    %879 = vmatpush.msra.mxu0 %v99
    %880 = vmatmul.f32.gmra.mxu0 %v842
    %v881 = vpop.f32.mrf.mxu0
    %v882 = vadd.f32 0.0, %v881
    %883 = vdwg.mxu0
    %884 = vmatpush.msra.mxu0 0.0
    %885 = vmatpush.msra.mxu0 0.0
    %886 = vmatpush.msra.mxu0 0.0
    %887 = vmatpush.msra.mxu0 0.0
    %888 = vmatpush.msra.mxu0 0.0
    %889 = vmatpush.msra.mxu0 0.0
    %890 = vmatpush.msra.mxu0 0.0
    %891 = vmatpush.msra.mxu0 0.0
    %892 = vmatpush.msra.mxu0 0.0
    %893 = vmatpush.msra.mxu0 0.0
    %894 = vmatpush.msra.mxu0 0.0
    %895 = vmatpush.msra.mxu0 0.0
    %896 = vmatpush.msra.mxu0 %v109
    %897 = vmatpush.msra.mxu0 %v106
    %898 = vmatpush.msra.mxu0 %v103
    %899 = vmatpush.msra.mxu0 %v100
    %900 = vmatmul.f32.gmra.mxu0 %v842
    %v901 = vpop.f32.mrf.mxu0
    %v902 = vadd.f32 0.0, %v901
    %903 = vdwg.mxu0
    %v904 = vadd.f32 %v838, %v862
    %v905 = vadd.f32 %v839, %v882
    %v906 = vxor.u32 %v904, 2147483648
    %v907 = vxor.u32 %v905, 2147483648
    %v908 = vmul.f32 %v906, 1.442695
    %v909 = vpow.pop %v908
    %v910 = vmul.f32 %v907, 1.442695
    %v911 = vpow.pop %v910
    %v912 = vadd.f32 %v909, 1.0
    %v913 = vadd.f32 %v911, 1.0
    %v914 = vrcp.pop %v912
    %v915 = vmul.f32 %v912, %v914
    %v916 = vsub.f32 1.0, %v915
    %v917 = vmul.f32 %v914, %v916
    %v918 = vadd.f32 %v914, %v917
    %vm919 = vweird.f32 %v912
    %vm920 = vweird.f32 %v914
    %vm921 = vmor %vm919, %vm920
    %v922 = vsel %vm921, %v914, %v918
    %v923 = vand.u32 2147483647, %v912
    %vm924 = vcmp.eq.f32.partialorder %v923, 8.507059e+37
    %v925 = vand.u32 %v912, 2147483648
    %v926 = vor.u32 1.1754944e-38, %v925
    %v927 = vsel %vm924, %v926, %v922
    %v928 = vmul.f32 1.0, %v927
    %v929 = vrcp.pop %v913
    %v930 = vmul.f32 %v913, %v929
    %v931 = vsub.f32 1.0, %v930
    %v932 = vmul.f32 %v929, %v931
    %v933 = vadd.f32 %v929, %v932
    %vm934 = vweird.f32 %v913
    %vm935 = vweird.f32 %v929
    %vm936 = vmor %vm934, %vm935
    %v937 = vsel %vm936, %v929, %v933
    %v938 = vand.u32 2147483647, %v913
    %vm939 = vcmp.eq.f32.partialorder %v938, 8.507059e+37
    %v940 = vand.u32 %v913, 2147483648
    %v941 = vor.u32 1.1754944e-38, %v940
    %v942 = vsel %vm939, %v941, %v937
    %v943 = vmul.f32 1.0, %v942
    %v944 = vadd.f32 %v902, %v110
    %v945 = vmul.f32 %v928, %v944
    %v946 = vadd.f32 %v840, %v945
    %v947 = vtanh.pop %v946
    %v948 = vsub.f32 %v836, %v947
    %v949 = vmul.f32 %v943, %v948
    %v950 = vadd.f32 %v947, %v949
    %s951 = scalar_lea.vmem [#allocation10], 48
    %v952 = vld [vmem:[%s951] sm:$0xff]
    %v953 = vmul.f32 %v952, %v950
    %954 = vst [vmem:[#allocation11 + $0x30] sm:$0xff] %v953
    %v955 = vsub.f32 1.0, %v952
    %v956 = vmul.f32 %v955, %v836
    %v957 = vadd.f32 %v953, %v956
    %s958 = scalar_lea.vmem [#allocation2], 168
    %v959 = vld [vmem:[%s958] sm:$0xff]
    %v960 = vld [vmem:[%s958 + $0x8] sm:$0xff]
    %v961 = vld [vmem:[%s958 + $0x10] sm:$0xff]
    %v963 = vsel %vm115, %v957, 0
    %965 = vmatpush.msra.mxu0 0.0
    %966 = vmatpush.msra.mxu0 0.0
    %967 = vmatpush.msra.mxu0 0.0
    %968 = vmatpush.msra.mxu0 0.0
    %969 = vmatpush.msra.mxu0 0.0
    %970 = vmatpush.msra.mxu0 0.0
    %971 = vmatpush.msra.mxu0 0.0
    %972 = vmatpush.msra.mxu0 0.0
    %973 = vmatpush.msra.mxu0 0.0
    %974 = vmatpush.msra.mxu0 0.0
    %975 = vmatpush.msra.mxu0 0.0
    %976 = vmatpush.msra.mxu0 0.0
    %977 = vmatpush.msra.mxu0 %v107
    %978 = vmatpush.msra.mxu0 %v104
    %979 = vmatpush.msra.mxu0 %v101
    %980 = vmatpush.msra.mxu0 %v98
    %981 = vmatmul.f32.gmra.mxu0 %v963
    %v982 = vpop.f32.mrf.mxu0
    %v983 = vadd.f32 0.0, %v982
    %984 = vdwg.mxu0
    %985 = vmatpush.msra.mxu0 0.0
    %986 = vmatpush.msra.mxu0 0.0
    %987 = vmatpush.msra.mxu0 0.0
    %988 = vmatpush.msra.mxu0 0.0
    %989 = vmatpush.msra.mxu0 0.0
    %990 = vmatpush.msra.mxu0 0.0
    %991 = vmatpush.msra.mxu0 0.0
    %992 = vmatpush.msra.mxu0 0.0
    %993 = vmatpush.msra.mxu0 0.0
    %994 = vmatpush.msra.mxu0 0.0
    %995 = vmatpush.msra.mxu0 0.0
    %996 = vmatpush.msra.mxu0 0.0
    %997 = vmatpush.msra.mxu0 %v108
    %998 = vmatpush.msra.mxu0 %v105
    %999 = vmatpush.msra.mxu0 %v102
    %1000 = vmatpush.msra.mxu0 %v99
    %1001 = vmatmul.f32.gmra.mxu0 %v963
    %v1002 = vpop.f32.mrf.mxu0
    %v1003 = vadd.f32 0.0, %v1002
    %1004 = vdwg.mxu0
    %1005 = vmatpush.msra.mxu0 0.0
    %1006 = vmatpush.msra.mxu0 0.0
    %1007 = vmatpush.msra.mxu0 0.0
    %1008 = vmatpush.msra.mxu0 0.0
    %1009 = vmatpush.msra.mxu0 0.0
    %1010 = vmatpush.msra.mxu0 0.0
    %1011 = vmatpush.msra.mxu0 0.0
    %1012 = vmatpush.msra.mxu0 0.0
    %1013 = vmatpush.msra.mxu0 0.0
    %1014 = vmatpush.msra.mxu0 0.0
    %1015 = vmatpush.msra.mxu0 0.0
    %1016 = vmatpush.msra.mxu0 0.0
    %1017 = vmatpush.msra.mxu0 %v109
    %1018 = vmatpush.msra.mxu0 %v106
    %1019 = vmatpush.msra.mxu0 %v103
    %1020 = vmatpush.msra.mxu0 %v100
    %1021 = vmatmul.f32.gmra.mxu0 %v963
    %v1022 = vpop.f32.mrf.mxu0
    %v1023 = vadd.f32 0.0, %v1022
    %1024 = vdwg.mxu0
    %v1025 = vadd.f32 %v959, %v983
    %v1026 = vadd.f32 %v960, %v1003
    %v1027 = vxor.u32 %v1025, 2147483648
    %v1028 = vxor.u32 %v1026, 2147483648
    %v1029 = vmul.f32 %v1027, 1.442695
    %v1030 = vpow.pop %v1029
    %v1031 = vmul.f32 %v1028, 1.442695
    %v1032 = vpow.pop %v1031
    %v1033 = vadd.f32 %v1030, 1.0
    %v1034 = vadd.f32 %v1032, 1.0
    %v1035 = vrcp.pop %v1033
    %v1036 = vmul.f32 %v1033, %v1035
    %v1037 = vsub.f32 1.0, %v1036
    %v1038 = vmul.f32 %v1035, %v1037
    %v1039 = vadd.f32 %v1035, %v1038
    %vm1040 = vweird.f32 %v1033
    %vm1041 = vweird.f32 %v1035
    %vm1042 = vmor %vm1040, %vm1041
    %v1043 = vsel %vm1042, %v1035, %v1039
    %v1044 = vand.u32 2147483647, %v1033
    %vm1045 = vcmp.eq.f32.partialorder %v1044, 8.507059e+37
    %v1046 = vand.u32 %v1033, 2147483648
    %v1047 = vor.u32 1.1754944e-38, %v1046
    %v1048 = vsel %vm1045, %v1047, %v1043
    %v1049 = vmul.f32 1.0, %v1048
    %v1050 = vrcp.pop %v1034
    %v1051 = vmul.f32 %v1034, %v1050
    %v1052 = vsub.f32 1.0, %v1051
    %v1053 = vmul.f32 %v1050, %v1052
    %v1054 = vadd.f32 %v1050, %v1053
    %vm1055 = vweird.f32 %v1034
    %vm1056 = vweird.f32 %v1050
    %vm1057 = vmor %vm1055, %vm1056
    %v1058 = vsel %vm1057, %v1050, %v1054
    %v1059 = vand.u32 2147483647, %v1034
    %vm1060 = vcmp.eq.f32.partialorder %v1059, 8.507059e+37
    %v1061 = vand.u32 %v1034, 2147483648
    %v1062 = vor.u32 1.1754944e-38, %v1061
    %v1063 = vsel %vm1060, %v1062, %v1058
    %v1064 = vmul.f32 1.0, %v1063
    %v1065 = vadd.f32 %v1023, %v110
    %v1066 = vmul.f32 %v1049, %v1065
    %v1067 = vadd.f32 %v961, %v1066
    %v1068 = vtanh.pop %v1067
    %v1069 = vsub.f32 %v957, %v1068
    %v1070 = vmul.f32 %v1064, %v1069
    %v1071 = vadd.f32 %v1068, %v1070
    %s1072 = scalar_lea.vmem [#allocation10], 56
    %v1073 = vld [vmem:[%s1072] sm:$0xff]
    %v1074 = vmul.f32 %v1073, %v1071
    %1075 = vst [vmem:[#allocation11 + $0x38] sm:$0xff] %v1074
    %v1076 = vsub.f32 1.0, %v1073
    %v1077 = vmul.f32 %v1076, %v957
    %v1078 = vadd.f32 %v1074, %v1077
    %1079 = vst [vmem:[#allocation12] sm:$0xff] %v1078
    // Predicated region
    $region42: #{tpu_custom_call.1} parent=1 // pred_check
      _
    $region43: #{tpu_custom_call.1} parent=1 // pred_check_branch
      %1081 = sbr.rel (0) target = $region45
    $region44: #{tpu_custom_call.1} parent=1 // pred_region
      %1083 = vsyncadd [#allocation4], 0
      %s1085 = sshll.u32 [#allocation11], 4
      %s1086 = int_to_ptr.vmem [resolvable:$true] %s1085
      %s1087 = sshll.u32 %s5, 4
      %s1088 = int_to_ptr.hbm [resolvable:$true] %s1087
      %1090 = dma.vmem_to_hbm [thread:$0]  %s1086, 1024, %s1088, [#allocation4]
    $region45: #{tpu_custom_call.1} parent=1 // pred_fallthru
      _
    // Predicated region
    $region46: #{tpu_custom_call.1} parent=1 // pred_check
      _
    $region47: #{tpu_custom_call.1} parent=1 // pred_check_branch
      %1092 = sbr.rel (0) target = $region49
    $region48: #{tpu_custom_call.1} parent=1 // pred_region
      %1094 = vsyncadd [#allocation13], 0
      %s1096 = sshll.u32 [#allocation12], 4
      %s1097 = int_to_ptr.vmem [resolvable:$true] %s1096
      %s1098 = sshll.u32 %s6, 4
      %s1099 = int_to_ptr.hbm [resolvable:$true] %s1098
      %1101 = dma.vmem_to_hbm [thread:$0]  %s1097, 128, %s1099, [#allocation13]
    $region49: #{tpu_custom_call.1} parent=1 // pred_fallthru
      _
    // Predicated region
    $region50: #{tpu_custom_call.1} parent=1 // pred_check
      _
    $region51: #{tpu_custom_call.1} parent=1 // pred_check_branch
      %1103 = sbr.rel (0) target = $region53
    $region52: #{tpu_custom_call.1} parent=1 // pred_region
      %1105 = dma.done [#allocation4], 1024
    $region53: #{tpu_custom_call.1} parent=1 // pred_fallthru
      _
    // Predicated region
    $region54: #{tpu_custom_call.1} parent=1 // pred_check
      _
    $region55: #{tpu_custom_call.1} parent=1 // pred_check_branch
      %1107 = sbr.rel (0) target = $region57
    $region56: #{tpu_custom_call.1} parent=1 // pred_region
      %1109 = dma.done [#allocation13], 128
    $region57: #{tpu_custom_call.1} parent=1 // pred_fallthru
      _
    %1110 = vsyncpa [#allocation3], 1
    %1111 = vsyncpa [#allocation6], 1
    %1112 = vsyncpa [#allocation9], 1
    %1113 = vsyncpa [#allocation4], 1
    %1114 = vsyncpa [#allocation13], 1

</llo_original>
